<compile_context>
chip_gen: v7x
topology: tpu7x:2x2x1
jax: 0.10.0
libtpu: 0.0.40
codegen_flags: <defaults>
</compile_context>

<pallas_src>
import functools

import jax
import jax.numpy as jnp
from jax import lax
from jax.experimental import pallas as pl
from jax.experimental.pallas import tpu as pltpu


_TRANS_B = (((1,), (1,)), ((), ()))  # contract dim 1 of both operands: x @ W^T


def _decoder_kernel(x_ref, w_ref, b_ref, o_ref, *, n_regions, latent_dim, feat):
    # x_ref: (tm, R*feat)        activation tile, full feature stride (slice happens here)
    # w_ref: (tn, R*latent_dim)  weight tile in PyTorch [out_features, in_features] layout
    # b_ref: (1, tn)             bias tile
    # o_ref: (tm, tn)            output tile
    acc = jnp.zeros(o_ref.shape, jnp.float32)
    for r in range(n_regions):  # static, small (n_regions)
        xr = x_ref[:, r * feat: r * feat + latent_dim]          # (tm, L)
        wr = w_ref[:, r * latent_dim: (r + 1) * latent_dim]     # (tn, L)
        acc += lax.dot_general(xr, wr, _TRANS_B,
                               preferred_element_type=jnp.float32)
    o_ref[...] = (acc + b_ref[...]).astype(o_ref.dtype)


def decoder_forward(data, weight, bias, *, latent_dim, tm=128, tn=256):
    """data:   [B, T, n_regions, feat] with feat >= latent_dim
       weight: [n_regions*input_dim, n_regions*latent_dim]  (PyTorch Linear layout)
       bias:   [n_regions*input_dim]
       returns [B, T, n_regions*input_dim]
    """
    B, T, R, F = data.shape
    N, K = weight.shape
    assert K == R * latent_dim and F >= latent_dim

    M = B * T
    x2d = data.reshape(M, R * F)   # contiguous row-major -> free reshape, no copy
    b2d = bias.reshape(1, N)

    tm = min(tm, M)
    tn = min(tn, N)
    grid = (pl.cdiv(M, tm), pl.cdiv(N, tn))

    kernel = functools.partial(_decoder_kernel, n_regions=R,
                               latent_dim=latent_dim, feat=F)

    out2d = pl.pallas_call(
        kernel,
        out_shape=jax.ShapeDtypeStruct((M, N), data.dtype),
        grid=grid,
        in_specs=[
            pl.BlockSpec((tm, R * F), lambda i, j: (i, 0)),  # activations (full feat dim)
            pl.BlockSpec((tn, K), lambda i, j: (j, 0)),      # weight tile, [N, K] layout
            pl.BlockSpec((1, tn), lambda i, j: (0, j)),      # bias tile
        ],
        out_specs=pl.BlockSpec((tm, tn), lambda i, j: (i, j)),
        compiler_params=pltpu.CompilerParams(
            dimension_semantics=("parallel", "parallel")),
    )(x2d, weight, b2d)

    return out2d.reshape(B, T, N)


if __name__ == "__main__":
    # Small shapes consistent with the module: Fp=True -> latent_dim = 3.
    B, T = 4, 64
    n_regions = 8
    input_dim = 64
    latent_dim = 3          # forced by Fp=True
    feat = 6                # incoming feature dim (>= latent_dim); forward slices to 3

    key = jax.random.PRNGKey(0)
    k_data, k_w = jax.random.split(key)

    data = jax.random.normal(k_data, (B, T, n_regions, feat), dtype=jnp.float32)

    out_features = n_regions * input_dim          # 512
    in_features = n_regions * latent_dim          # 24
    # utils.init_network_weights: normal(0, 0.1) weights, zero bias.
    weight = 0.1 * jax.random.normal(k_w, (out_features, in_features), dtype=jnp.float32)
    bias = jnp.zeros((out_features,), dtype=jnp.float32)

    fwd = jax.jit(functools.partial(decoder_forward, latent_dim=latent_dim))
    out = jax.block_until_ready(fwd(data, weight, bias))

    # Pure-JAX reference for correctness.
    x_ref = data[..., :latent_dim].reshape(B * T, in_features)
    ref = (x_ref @ weight.T + bias).reshape(B, T, out_features)
    assert out.shape == (B, T, out_features)
    assert jnp.allclose(out, ref, atol=1e-5, rtol=1e-5)

    print("KERNEL_OK")
</pallas_src>

<mosaic_0001>
module attributes {stable_mosaic.version = 11 : i64} {
  func.func @_decoder_kernel(%arg0: i32, %arg1: i32, %arg2: memref<128x48xf32, #tpu.memory_space<vmem>>, %arg3: memref<256x24xf32, #tpu.memory_space<vmem>>, %arg4: memref<1x256xf32, #tpu.memory_space<vmem>>, %arg5: memref<128x256xf32, #tpu.memory_space<vmem>>) attributes {dimension_semantics = [#tpu.dimension_semantics<parallel>, #tpu.dimension_semantics<parallel>], iteration_bounds = array<i64: 2, 2>, scalar_prefetch = 0 : i64, scratch_operands = 0 : i64, tpu.core_type = #tpu.core_type<tc>, window_params = [{transform_indices = @transform_0, window_bounds = array<i64: 128, 48>}, {transform_indices = @transform_1, window_bounds = array<i64: 256, 24>}, {transform_indices = @transform_2, window_bounds = array<i64: 1, 256>}, {transform_indices = @transform_3, window_bounds = array<i64: 128, 256>}]} {
    %cst = arith.constant 0.000000e+00 : f32
    %0 = vector.broadcast %cst : f32 to vector<128x256xf32>
    %c0 = arith.constant 0 : index
    %c0_0 = arith.constant 0 : index
    %1 = vector.load %arg2[%c0, %c0_0] : memref<128x48xf32, #tpu.memory_space<vmem>>, vector<128x3xf32>
    %c0_1 = arith.constant 0 : index
    %c0_2 = arith.constant 0 : index
    %2 = vector.load %arg3[%c0_1, %c0_2] : memref<256x24xf32, #tpu.memory_space<vmem>>, vector<256x3xf32>
    %cst_3 = arith.constant dense<0.000000e+00> : vector<128x256xf32>
    %3 = tpu.matmul %1, %2, %cst_3 {dimension_numbers = #tpu.dot_dimension_numbers<[1], [1], [0], [0], [0, 0, 1, 0], [], []>} : vector<128x3xf32>, vector<256x3xf32>, vector<128x256xf32> -> vector<128x256xf32>
    %4 = arith.addf %0, %3 : vector<128x256xf32>
    %c0_4 = arith.constant 0 : index
    %c6 = arith.constant 6 : index
    %5 = vector.load %arg2[%c0_4, %c6] : memref<128x48xf32, #tpu.memory_space<vmem>>, vector<128x3xf32>
    %c0_5 = arith.constant 0 : index
    %c3 = arith.constant 3 : index
    %6 = vector.load %arg3[%c0_5, %c3] : memref<256x24xf32, #tpu.memory_space<vmem>>, vector<256x3xf32>
    %cst_6 = arith.constant dense<0.000000e+00> : vector<128x256xf32>
    %7 = tpu.matmul %5, %6, %cst_6 {dimension_numbers = #tpu.dot_dimension_numbers<[1], [1], [0], [0], [0, 0, 1, 0], [], []>} : vector<128x3xf32>, vector<256x3xf32>, vector<128x256xf32> -> vector<128x256xf32>
    %8 = arith.addf %4, %7 : vector<128x256xf32>
    %c0_7 = arith.constant 0 : index
    %c12 = arith.constant 12 : index
    %9 = vector.load %arg2[%c0_7, %c12] : memref<128x48xf32, #tpu.memory_space<vmem>>, vector<128x3xf32>
    %c0_8 = arith.constant 0 : index
    %c6_9 = arith.constant 6 : index
    %10 = vector.load %arg3[%c0_8, %c6_9] : memref<256x24xf32, #tpu.memory_space<vmem>>, vector<256x3xf32>
    %cst_10 = arith.constant dense<0.000000e+00> : vector<128x256xf32>
    %11 = tpu.matmul %9, %10, %cst_10 {dimension_numbers = #tpu.dot_dimension_numbers<[1], [1], [0], [0], [0, 0, 1, 0], [], []>} : vector<128x3xf32>, vector<256x3xf32>, vector<128x256xf32> -> vector<128x256xf32>
    %12 = arith.addf %8, %11 : vector<128x256xf32>
    %c0_11 = arith.constant 0 : index
    %c18 = arith.constant 18 : index
    %13 = vector.load %arg2[%c0_11, %c18] : memref<128x48xf32, #tpu.memory_space<vmem>>, vector<128x3xf32>
    %c0_12 = arith.constant 0 : index
    %c9 = arith.constant 9 : index
    %14 = vector.load %arg3[%c0_12, %c9] : memref<256x24xf32, #tpu.memory_space<vmem>>, vector<256x3xf32>
    %cst_13 = arith.constant dense<0.000000e+00> : vector<128x256xf32>
    %15 = tpu.matmul %13, %14, %cst_13 {dimension_numbers = #tpu.dot_dimension_numbers<[1], [1], [0], [0], [0, 0, 1, 0], [], []>} : vector<128x3xf32>, vector<256x3xf32>, vector<128x256xf32> -> vector<128x256xf32>
    %16 = arith.addf %12, %15 : vector<128x256xf32>
    %c0_14 = arith.constant 0 : index
    %c24 = arith.constant 24 : index
    %17 = vector.load %arg2[%c0_14, %c24] : memref<128x48xf32, #tpu.memory_space<vmem>>, vector<128x3xf32>
    %c0_15 = arith.constant 0 : index
    %c12_16 = arith.constant 12 : index
    %18 = vector.load %arg3[%c0_15, %c12_16] : memref<256x24xf32, #tpu.memory_space<vmem>>, vector<256x3xf32>
    %cst_17 = arith.constant dense<0.000000e+00> : vector<128x256xf32>
    %19 = tpu.matmul %17, %18, %cst_17 {dimension_numbers = #tpu.dot_dimension_numbers<[1], [1], [0], [0], [0, 0, 1, 0], [], []>} : vector<128x3xf32>, vector<256x3xf32>, vector<128x256xf32> -> vector<128x256xf32>
    %20 = arith.addf %16, %19 : vector<128x256xf32>
    %c0_18 = arith.constant 0 : index
    %c30 = arith.constant 30 : index
    %21 = vector.load %arg2[%c0_18, %c30] : memref<128x48xf32, #tpu.memory_space<vmem>>, vector<128x3xf32>
    %c0_19 = arith.constant 0 : index
    %c15 = arith.constant 15 : index
    %22 = vector.load %arg3[%c0_19, %c15] : memref<256x24xf32, #tpu.memory_space<vmem>>, vector<256x3xf32>
    %cst_20 = arith.constant dense<0.000000e+00> : vector<128x256xf32>
    %23 = tpu.matmul %21, %22, %cst_20 {dimension_numbers = #tpu.dot_dimension_numbers<[1], [1], [0], [0], [0, 0, 1, 0], [], []>} : vector<128x3xf32>, vector<256x3xf32>, vector<128x256xf32> -> vector<128x256xf32>
    %24 = arith.addf %20, %23 : vector<128x256xf32>
    %c0_21 = arith.constant 0 : index
    %c36 = arith.constant 36 : index
    %25 = vector.load %arg2[%c0_21, %c36] : memref<128x48xf32, #tpu.memory_space<vmem>>, vector<128x3xf32>
    %c0_22 = arith.constant 0 : index
    %c18_23 = arith.constant 18 : index
    %26 = vector.load %arg3[%c0_22, %c18_23] : memref<256x24xf32, #tpu.memory_space<vmem>>, vector<256x3xf32>
    %cst_24 = arith.constant dense<0.000000e+00> : vector<128x256xf32>
    %27 = tpu.matmul %25, %26, %cst_24 {dimension_numbers = #tpu.dot_dimension_numbers<[1], [1], [0], [0], [0, 0, 1, 0], [], []>} : vector<128x3xf32>, vector<256x3xf32>, vector<128x256xf32> -> vector<128x256xf32>
    %28 = arith.addf %24, %27 : vector<128x256xf32>
    %c0_25 = arith.constant 0 : index
    %c42 = arith.constant 42 : index
    %29 = vector.load %arg2[%c0_25, %c42] : memref<128x48xf32, #tpu.memory_space<vmem>>, vector<128x3xf32>
    %c0_26 = arith.constant 0 : index
    %c21 = arith.constant 21 : index
    %30 = vector.load %arg3[%c0_26, %c21] : memref<256x24xf32, #tpu.memory_space<vmem>>, vector<256x3xf32>
    %cst_27 = arith.constant dense<0.000000e+00> : vector<128x256xf32>
    %31 = tpu.matmul %29, %30, %cst_27 {dimension_numbers = #tpu.dot_dimension_numbers<[1], [1], [0], [0], [0, 0, 1, 0], [], []>} : vector<128x3xf32>, vector<256x3xf32>, vector<128x256xf32> -> vector<128x256xf32>
    %32 = arith.addf %28, %31 : vector<128x256xf32>
    %c0_28 = arith.constant 0 : index
    %c0_29 = arith.constant 0 : index
    %33 = vector.load %arg4[%c0_28, %c0_29] : memref<1x256xf32, #tpu.memory_space<vmem>>, vector<1x256xf32>
    %34 = vector.broadcast %33 : vector<1x256xf32> to vector<128x256xf32>
    %35 = arith.addf %32, %34 : vector<128x256xf32>
    %c0_30 = arith.constant 0 : index
    %c0_31 = arith.constant 0 : index
    %36 = vector.load %arg5[%c0_30, %c0_31] : memref<128x256xf32, #tpu.memory_space<vmem>>, vector<128x256xf32>
    tpu.vector_store %arg5[%c0_30, %c0_31], %35 {strides = array<i32>} : memref<128x256xf32, #tpu.memory_space<vmem>>, vector<128x256xf32>,
    return
  }
  func.func @transform_0(%arg0: i32, %arg1: i32) -> (i32, i32) {
    %c0_i32 = arith.constant 0 : i32
    %c0_i32_0 = arith.constant 0 : i32
    return %arg0, %c0_i32 : i32, i32
  }
  func.func @transform_1(%arg0: i32, %arg1: i32) -> (i32, i32) {
    %c0_i32 = arith.constant 0 : i32
    %c0_i32_0 = arith.constant 0 : i32
    return %arg1, %c0_i32 : i32, i32
  }
  func.func @transform_2(%arg0: i32, %arg1: i32) -> (i32, i32) {
    %c0_i32 = arith.constant 0 : i32
    %c0_i32_0 = arith.constant 0 : i32
    return %c0_i32, %arg1 : i32, i32
  }
  func.func @transform_3(%arg0: i32, %arg1: i32) -> (i32, i32) {
    %c0_i32 = arith.constant 0 : i32
    return %arg0, %arg1 : i32, i32
  }
}

</mosaic_0001>

<llo_original>
// kernel: decoder_forward.1
$region0: #{decoder_forward.1}
  #allocation0 [shape = 'u32[]', space=smem, size = 0x4, offset = 0x4, fixed_abs, tag = 'smem constant byte address 0x4 - core index']
  #allocation1 [shape = 'u32[144,128]{1,0:T(1,128)}', space=vmem, size = 0x12000, scoped, tag = 'internal scratch']
  %s0 = inlined_call_operand.vmem [shape: f32[256,48], index: 0, kind: input, shape index: {}]
  %s1 = inlined_call_operand.vmem [shape: f32[512,24], index: 1, kind: input, shape index: {}]
  %s2 = inlined_call_operand.vmem [shape: f32[1,512], index: 2, kind: input, shape index: {}]
  %s3 = inlined_call_operand.hbm [shape: f32[256,512], index: 3, kind: output, shape index: {}]
  %s4 = sld [smem:[#allocation0]]
  $region45: #{decoder_forward.1} parent=0
    _
  %s6 = ssub.s32 1, %s4
  %s7 = scalar_select 0, %s6, %s4
  $region1: #{decoder_forward.1} parent=0
    #allocation2 [shape = 'u8[262144]{0}', space=vmem, size = 0x40000, scoped, tag = 'output window, operand 0']
    #allocation3 [shape = 's32[2]{0}', space=sflag, size = 0x8, scoped, tag = 'scoped memory for decoder_forward.1']
    %8 = vsyncpa [#allocation3], 0
    %s9 = scalar_lea.sflag [#allocation3], 1
    %10 = vsyncpa %s9, 0
    loop: start=0, step=1, limit=6
    $region2: #{decoder_forward.1} parent=1 // loop_pre_header
      _
    $region3: #{decoder_forward.1} parent=1 // loop_header
      %s12 = sphi 0, %s16
      %p13 = scmp.ge.s32.totalorder %s12, 6
      %s19 = sphi 0, %s31
      %s20 = sphi 0, %s27
      %s21 = sphi 0, %s19
      %s22 = sphi 0, %s20
      %s23 = sphi 0, %s21
      %s24 = sphi 0, %s22
      %s34 = sphi 0, %s36
      %s37 = sphi 0, %s34
      %s38 = sphi 0, %s37
      %s54 = sphi 0, %s38
      %s60 = sphi 0, %s62
      %s63 = sphi 0, %s60
      %s64 = sphi 0, %s63
      %s80 = sphi 0, %s64
      %s86 = sphi 0, %s88
      %s89 = sphi 0, %s86
      %s90 = sphi 0, %s89
      %s106 = sphi 0, %s90
      %s114 = sphi 0, %s116
      %s117 = sphi 0, %s114
      %s118 = sphi 0, %s117
      %s134 = sphi 0, %s118
    $region4: #{decoder_forward.1} parent=1 // loop_header_branch
      %15 = sbr.rel (%p13) target = $region8
    $region5: #{decoder_forward.1} parent=1 // loop_body
      %s17 = ssub.s32 %s12, 1
      %s18 = ssub.s32 %s12, 2
      %s25 = sadd.s32 1, %s20
      %p26 = scmp.ge.s32.totalorder %s25, 2
      %s27 = scalar_select %p26, 0, %s25
      %s28 = sadd.s32 1, %s19
      %s29 = scalar_select %p26, %s28, %s19
      %p30 = scmp.ge.s32.totalorder %s29, 2
      %s31 = scalar_select %p30, 0, %s29
      %s32 = ssub.s32 %s19, %s31
      %p33 = scmp.eq.s32.totalorder %s32, 0
      %s35 = sadd.s32 %s34, 1
      %s36 = scalar_select %p33, %s34, %s35
      %p39 = pneg %p33
      %p40 = scmp.eq.s32.totalorder %s12, 3
      %p41 = por %p39, %p40
      %p42 = scmp.ne.s32.totalorder %s34, %s37
      %p43 = scmp.eq.s32.totalorder %s12, 0
      %p44 = por %p42, %p43
      %p45 = scmp.ne.s32.totalorder %s34, %s37
      %p46 = scmp.eq.s32.totalorder %s17, 3
      %p47 = por %p45, %p46
      %p48 = scmp.ne.s32.totalorder %s37, %s38
      %p49 = scmp.eq.s32.totalorder %s17, 0
      %p50 = por %p48, %p49
      %p51 = scmp.ne.s32.totalorder %s37, %s38
      %p52 = scmp.eq.s32.totalorder %s18, 3
      %p53 = por %p51, %p52
      %p55 = scmp.ne.s32.totalorder %s38, %s54
      %p56 = scmp.eq.s32.totalorder %s18, 0
      %p57 = por %p55, %p56
      %s58 = ssub.s32 %s20, %s27
      %p59 = scmp.eq.s32.totalorder %s58, 0
      %s61 = sadd.s32 %s60, 1
      %s62 = scalar_select %p59, %s60, %s61
      %p65 = pneg %p59
      %p66 = scmp.eq.s32.totalorder %s12, 3
      %p67 = por %p65, %p66
      %p68 = scmp.ne.s32.totalorder %s60, %s63
      %p69 = scmp.eq.s32.totalorder %s12, 0
      %p70 = por %p68, %p69
      %p71 = scmp.ne.s32.totalorder %s60, %s63
      %p72 = scmp.eq.s32.totalorder %s17, 3
      %p73 = por %p71, %p72
      %p74 = scmp.ne.s32.totalorder %s63, %s64
      %p75 = scmp.eq.s32.totalorder %s17, 0
      %p76 = por %p74, %p75
      %p77 = scmp.ne.s32.totalorder %s63, %s64
      %p78 = scmp.eq.s32.totalorder %s18, 3
      %p79 = por %p77, %p78
      %p81 = scmp.ne.s32.totalorder %s64, %s80
      %p82 = scmp.eq.s32.totalorder %s18, 0
      %p83 = por %p81, %p82
      %s84 = ssub.s32 %s20, %s27
      %p85 = scmp.eq.s32.totalorder %s84, 0
      %s87 = sadd.s32 %s86, 1
      %s88 = scalar_select %p85, %s86, %s87
      %p91 = pneg %p85
      %p92 = scmp.eq.s32.totalorder %s12, 3
      %p93 = por %p91, %p92
      %p94 = scmp.ne.s32.totalorder %s86, %s89
      %p95 = scmp.eq.s32.totalorder %s12, 0
      %p96 = por %p94, %p95
      %p97 = scmp.ne.s32.totalorder %s86, %s89
      %p98 = scmp.eq.s32.totalorder %s17, 3
      %p99 = por %p97, %p98
      %p100 = scmp.ne.s32.totalorder %s89, %s90
      %p101 = scmp.eq.s32.totalorder %s17, 0
      %p102 = por %p100, %p101
      %p103 = scmp.ne.s32.totalorder %s89, %s90
      %p104 = scmp.eq.s32.totalorder %s18, 3
      %p105 = por %p103, %p104
      %p107 = scmp.ne.s32.totalorder %s90, %s106
      %p108 = scmp.eq.s32.totalorder %s18, 0
      %p109 = por %p107, %p108
      %s110 = ssub.s32 %s19, %s31
      %s111 = ssub.s32 %s20, %s27
      %s112 = sor.u32 %s110, %s111
      %p113 = scmp.eq.s32.totalorder %s112, 0
      %s115 = sadd.s32 %s114, 1
      %s116 = scalar_select %p113, %s114, %s115
      %p119 = pneg %p113
      %p120 = scmp.eq.s32.totalorder %s12, 3
      %p121 = por %p119, %p120
      %p122 = scmp.ne.s32.totalorder %s114, %s117
      %p123 = scmp.eq.s32.totalorder %s12, 0
      %p124 = por %p122, %p123
      %p125 = scmp.ne.s32.totalorder %s114, %s117
      %p126 = scmp.eq.s32.totalorder %s17, 3
      %p127 = por %p125, %p126
      %p128 = scmp.ne.s32.totalorder %s117, %s118
      %p129 = scmp.eq.s32.totalorder %s17, 0
      %p130 = por %p128, %p129
      %p131 = scmp.ne.s32.totalorder %s117, %s118
      %p132 = scmp.eq.s32.totalorder %s18, 3
      %p133 = por %p131, %p132
      %p135 = scmp.ne.s32.totalorder %s118, %s134
      %p136 = scmp.eq.s32.totalorder %s18, 0
      %p137 = por %p135, %p136
      %p138 = scmp.le.s32.totalorder 1, %s12
      %p139 = scmp.lt.s32.totalorder %s12, 5
      %p140 = pnand %p138, %p139
      %p141 = pneg %p140
      // Predicated region
      $region9: #{decoder_forward.1} parent=5 // pred_check
        _
      $region10: #{decoder_forward.1} parent=5 // pred_check_branch
        %143 = sbr.rel (%p140) target = $region12
      $region11: #{decoder_forward.1} parent=5 // pred_region
        %s144 = ssub.s32 %s12, 1
      $region12: #{decoder_forward.1} parent=5 // pred_fallthru
        _
      %p145 = scmp.lt.s32.totalorder %s12, 4
      // Predicated region
      $region13: #{decoder_forward.1} parent=5 // pred_check
        %p146 = pneg %p145
      $region14: #{decoder_forward.1} parent=5 // pred_check_branch
        %148 = sbr.rel (%p146) target = $region16
      $region15: #{decoder_forward.1} parent=5 // pred_region
        // Predicated region
        $region17: #{decoder_forward.1} parent=15 // pred_check
          %p149 = pneg %p44
        $region18: #{decoder_forward.1} parent=15 // pred_check_branch
          %151 = sbr.rel (%p149) target = $region20
        $region19: #{decoder_forward.1} parent=15 // pred_region
          %s152 = smul.u32 16, %s19
          %p153 = scmp.lt.s32.totalorder %s152, 31
          %s154 = scalar_select %p153, %s152, 31
          %s155 = smul.addr %s154, 8
          %s156 = scalar_lea.vmem %s0, %s155
          %s157 = smul.u32 16, %s19
        $region20: #{decoder_forward.1} parent=15 // pred_fallthru
          _
        // Predicated region
        $region21: #{decoder_forward.1} parent=15 // pred_check
          %p158 = pneg %p70
        $region22: #{decoder_forward.1} parent=15 // pred_check_branch
          %160 = sbr.rel (%p158) target = $region24
        $region23: #{decoder_forward.1} parent=15 // pred_region
          %s161 = smul.u32 32, %s20
          %p162 = scmp.lt.s32.totalorder %s161, 63
          %s163 = scalar_select %p162, %s161, 63
          %s164 = smul.addr %s163, 8
          %s165 = scalar_lea.vmem %s1, %s164
          %s166 = smul.u32 32, %s20
        $region24: #{decoder_forward.1} parent=15 // pred_fallthru
          _
        // Predicated region
        $region25: #{decoder_forward.1} parent=15 // pred_check
          %p167 = pneg %p96
        $region26: #{decoder_forward.1} parent=15 // pred_check_branch
          %169 = sbr.rel (%p167) target = $region28
        $region27: #{decoder_forward.1} parent=15 // pred_region
          %s170 = smul.u32 2, %s20
          %p171 = scmp.lt.s32.totalorder %s170, 3
          %s172 = scalar_select %p171, %s170, 3
          %s173 = scalar_lea.vmem %s2, %s172
          %s174 = smul.u32 2, %s20
        $region28: #{decoder_forward.1} parent=15 // pred_fallthru
          _
      $region16: #{decoder_forward.1} parent=5 // pred_fallthru
        _
      %p175 = scmp.le.s32.totalorder 1, %s12
      %p176 = scmp.lt.s32.totalorder %s12, 5
      %p177 = pnand %p175, %p176
      %p178 = pneg %p177
      // Predicated region
      $region29: #{decoder_forward.1} parent=5 // pred_check
        _
      $region30: #{decoder_forward.1} parent=5 // pred_check_branch
        %180 = sbr.rel (%p177) target = $region32
      $region31: #{decoder_forward.1} parent=5 // pred_region
        %s181 = ssub.s32 %s12, 1
        %s182 = smul.u32 16, %s21
        %p183 = scmp.lt.s32.totalorder %s182, 31
        %s184 = scalar_select %p183, %s182, 31
        %s185 = smul.addr %s184, 8
        %s186 = scalar_lea.vmem %s0, %s185
        %p187 = pneg %p50
        %p188 = pneg %p47
        %s189 = smul.u32 32, %s22
        %p190 = scmp.lt.s32.totalorder %s189, 63
        %s191 = scalar_select %p190, %s189, 63
        %s192 = smul.addr %s191, 8
        %s193 = scalar_lea.vmem %s1, %s192
        %p194 = pneg %p76
        %p195 = pneg %p73
        %s196 = smul.u32 2, %s22
        %p197 = scmp.lt.s32.totalorder %s196, 3
        %s198 = scalar_select %p197, %s196, 3
        %s199 = scalar_lea.vmem %s2, %s198
        %p200 = pneg %p102
        %p201 = pneg %p99
        %p202 = pneg %p130
        %p203 = pneg %p127
        %s204 = sand.u32 %s117, 1
        %s205 = scalar_lea.sflag [#allocation3], %s204
        %s206 = sand.u32 %s117, 1
        %s207 = smul.addr %s206, 256
        %s208 = scalar_lea.vmem [#allocation2], %s207
        %s209 = smul.u32 16, %s21
        %p210 = scmp.lt.s32.totalorder %s209, 31
        %s211 = scalar_select %p210, %s209, 31
        %s212 = smul.addr %s211, 8
        %s213 = scalar_lea.vmem %s0, %s212
        %s214 = smul.u32 16, %s21
        %s215 = smul.u32 32, %s22
        %p216 = scmp.lt.s32.totalorder %s215, 63
        %s217 = scalar_select %p216, %s215, 63
        %s218 = smul.addr %s217, 8
        %s219 = scalar_lea.vmem %s1, %s218
        %s220 = smul.u32 32, %s22
        %s221 = smul.u32 2, %s22
        %p222 = scmp.lt.s32.totalorder %s221, 3
        %s223 = scalar_select %p222, %s221, 3
        %s224 = scalar_lea.vmem %s2, %s223
        %s225 = smul.u32 2, %s22
        %s226 = smul.u32 16, %s21
        %s227 = smul.u32 2, %s22
        %v228 = vld [vmem:[%s213] sm:$0xff]
        %v229 = vld [vmem:[%s213 + $0x8] sm:$0xff]
        %v230 = vld [vmem:[%s213 + $0x10] sm:$0xff]
        %v231 = vld [vmem:[%s213 + $0x18] sm:$0xff]
        %v232 = vld [vmem:[%s213 + $0x20] sm:$0xff]
        %v233 = vld [vmem:[%s213 + $0x28] sm:$0xff]
        %v234 = vld [vmem:[%s213 + $0x30] sm:$0xff]
        %v235 = vld [vmem:[%s213 + $0x38] sm:$0xff]
        %v236 = vld [vmem:[%s213 + $0x40] sm:$0xff]
        %v237 = vld [vmem:[%s213 + $0x48] sm:$0xff]
        %v238 = vld [vmem:[%s213 + $0x50] sm:$0xff]
        %v239 = vld [vmem:[%s213 + $0x58] sm:$0xff]
        %v240 = vld [vmem:[%s213 + $0x60] sm:$0xff]
        %v241 = vld [vmem:[%s213 + $0x68] sm:$0xff]
        %v242 = vld [vmem:[%s213 + $0x70] sm:$0xff]
        %v243 = vld [vmem:[%s213 + $0x78] sm:$0xff]
        %v244 = vld [vmem:[%s219] sm:$0xff]
        %v245 = vld [vmem:[%s219 + $0x8] sm:$0xff]
        %v246 = vld [vmem:[%s219 + $0x10] sm:$0xff]
        %v247 = vld [vmem:[%s219 + $0x18] sm:$0xff]
        %v248 = vld [vmem:[%s219 + $0x20] sm:$0xff]
        %v249 = vld [vmem:[%s219 + $0x28] sm:$0xff]
        %v250 = vld [vmem:[%s219 + $0x30] sm:$0xff]
        %v251 = vld [vmem:[%s219 + $0x38] sm:$0xff]
        %v252 = vld [vmem:[%s219 + $0x40] sm:$0xff]
        %v253 = vld [vmem:[%s219 + $0x48] sm:$0xff]
        %v254 = vld [vmem:[%s219 + $0x50] sm:$0xff]
        %v255 = vld [vmem:[%s219 + $0x58] sm:$0xff]
        %v256 = vld [vmem:[%s219 + $0x60] sm:$0xff]
        %v257 = vld [vmem:[%s219 + $0x68] sm:$0xff]
        %v258 = vld [vmem:[%s219 + $0x70] sm:$0xff]
        %v259 = vld [vmem:[%s219 + $0x78] sm:$0xff]
        %v260 = vld [vmem:[%s219 + $0x80] sm:$0xff]
        %v261 = vld [vmem:[%s219 + $0x88] sm:$0xff]
        %v262 = vld [vmem:[%s219 + $0x90] sm:$0xff]
        %v263 = vld [vmem:[%s219 + $0x98] sm:$0xff]
        %v264 = vld [vmem:[%s219 + $0xa0] sm:$0xff]
        %v265 = vld [vmem:[%s219 + $0xa8] sm:$0xff]
        %v266 = vld [vmem:[%s219 + $0xb0] sm:$0xff]
        %v267 = vld [vmem:[%s219 + $0xb8] sm:$0xff]
        %v268 = vld [vmem:[%s219 + $0xc0] sm:$0xff]
        %v269 = vld [vmem:[%s219 + $0xc8] sm:$0xff]
        %v270 = vld [vmem:[%s219 + $0xd0] sm:$0xff]
        %v271 = vld [vmem:[%s219 + $0xd8] sm:$0xff]
        %v272 = vld [vmem:[%s219 + $0xe0] sm:$0xff]
        %v273 = vld [vmem:[%s219 + $0xe8] sm:$0xff]
        %v274 = vld [vmem:[%s219 + $0xf0] sm:$0xff]
        %v275 = vld [vmem:[%s219 + $0xf8] sm:$0xff]
        %292 = vrot.lane.b32.xlu0 %v228, 122
        %v293 = vpop.permute.xlu0 %292
        %294 = vrot.lane.b32.xlu0 %v229, 122
        %v295 = vpop.permute.xlu0 %294
        %296 = vrot.lane.b32.xlu0 %v230, 122
        %v297 = vpop.permute.xlu0 %296
        %298 = vrot.lane.b32.xlu0 %v231, 122
        %v299 = vpop.permute.xlu0 %298
        %300 = vrot.lane.b32.xlu0 %v232, 122
        %v301 = vpop.permute.xlu0 %300
        %302 = vrot.lane.b32.xlu0 %v233, 122
        %v303 = vpop.permute.xlu0 %302
        %304 = vrot.lane.b32.xlu0 %v234, 122
        %v305 = vpop.permute.xlu0 %304
        %306 = vrot.lane.b32.xlu0 %v235, 122
        %v307 = vpop.permute.xlu0 %306
        %308 = vrot.lane.b32.xlu0 %v236, 122
        %v309 = vpop.permute.xlu0 %308
        %310 = vrot.lane.b32.xlu0 %v237, 122
        %v311 = vpop.permute.xlu0 %310
        %312 = vrot.lane.b32.xlu0 %v238, 122
        %v313 = vpop.permute.xlu0 %312
        %314 = vrot.lane.b32.xlu0 %v239, 122
        %v315 = vpop.permute.xlu0 %314
        %316 = vrot.lane.b32.xlu0 %v240, 122
        %v317 = vpop.permute.xlu0 %316
        %318 = vrot.lane.b32.xlu0 %v241, 122
        %v319 = vpop.permute.xlu0 %318
        %320 = vrot.lane.b32.xlu0 %v242, 122
        %v321 = vpop.permute.xlu0 %320
        %322 = vrot.lane.b32.xlu0 %v243, 122
        %v323 = vpop.permute.xlu0 %322
        %356 = vrot.lane.b32.xlu0 %v244, 125
        %v357 = vpop.permute.xlu0 %356
        %358 = vrot.lane.b32.xlu0 %v245, 125
        %v359 = vpop.permute.xlu0 %358
        %360 = vrot.lane.b32.xlu0 %v246, 125
        %v361 = vpop.permute.xlu0 %360
        %362 = vrot.lane.b32.xlu0 %v247, 125
        %v363 = vpop.permute.xlu0 %362
        %364 = vrot.lane.b32.xlu0 %v248, 125
        %v365 = vpop.permute.xlu0 %364
        %366 = vrot.lane.b32.xlu0 %v249, 125
        %v367 = vpop.permute.xlu0 %366
        %368 = vrot.lane.b32.xlu0 %v250, 125
        %v369 = vpop.permute.xlu0 %368
        %370 = vrot.lane.b32.xlu0 %v251, 125
        %v371 = vpop.permute.xlu0 %370
        %372 = vrot.lane.b32.xlu0 %v252, 125
        %v373 = vpop.permute.xlu0 %372
        %374 = vrot.lane.b32.xlu0 %v253, 125
        %v375 = vpop.permute.xlu0 %374
        %376 = vrot.lane.b32.xlu0 %v254, 125
        %v377 = vpop.permute.xlu0 %376
        %378 = vrot.lane.b32.xlu0 %v255, 125
        %v379 = vpop.permute.xlu0 %378
        %380 = vrot.lane.b32.xlu0 %v256, 125
        %v381 = vpop.permute.xlu0 %380
        %382 = vrot.lane.b32.xlu0 %v257, 125
        %v383 = vpop.permute.xlu0 %382
        %384 = vrot.lane.b32.xlu0 %v258, 125
        %v385 = vpop.permute.xlu0 %384
        %386 = vrot.lane.b32.xlu0 %v259, 125
        %v387 = vpop.permute.xlu0 %386
        %388 = vrot.lane.b32.xlu0 %v260, 125
        %v389 = vpop.permute.xlu0 %388
        %390 = vrot.lane.b32.xlu0 %v261, 125
        %v391 = vpop.permute.xlu0 %390
        %392 = vrot.lane.b32.xlu0 %v262, 125
        %v393 = vpop.permute.xlu0 %392
        %394 = vrot.lane.b32.xlu0 %v263, 125
        %v395 = vpop.permute.xlu0 %394
        %396 = vrot.lane.b32.xlu0 %v264, 125
        %v397 = vpop.permute.xlu0 %396
        %398 = vrot.lane.b32.xlu0 %v265, 125
        %v399 = vpop.permute.xlu0 %398
        %400 = vrot.lane.b32.xlu0 %v266, 125
        %v401 = vpop.permute.xlu0 %400
        %402 = vrot.lane.b32.xlu0 %v267, 125
        %v403 = vpop.permute.xlu0 %402
        %404 = vrot.lane.b32.xlu0 %v268, 125
        %v405 = vpop.permute.xlu0 %404
        %406 = vrot.lane.b32.xlu0 %v269, 125
        %v407 = vpop.permute.xlu0 %406
        %408 = vrot.lane.b32.xlu0 %v270, 125
        %v409 = vpop.permute.xlu0 %408
        %410 = vrot.lane.b32.xlu0 %v271, 125
        %v411 = vpop.permute.xlu0 %410
        %412 = vrot.lane.b32.xlu0 %v272, 125
        %v413 = vpop.permute.xlu0 %412
        %414 = vrot.lane.b32.xlu0 %v273, 125
        %v415 = vpop.permute.xlu0 %414
        %416 = vrot.lane.b32.xlu0 %v274, 125
        %v417 = vpop.permute.xlu0 %416
        %418 = vrot.lane.b32.xlu0 %v275, 125
        %v419 = vpop.permute.xlu0 %418
        %vm420 = vcmask 23552
        %v421 = vsel %vm420, %v293, 0
        %v423 = vsel %vm420, %v295, 0
        %v425 = vsel %vm420, %v297, 0
        %v427 = vsel %vm420, %v299, 0
        %v429 = vsel %vm420, %v301, 0
        %v431 = vsel %vm420, %v303, 0
        %v433 = vsel %vm420, %v305, 0
        %v435 = vsel %vm420, %v307, 0
        %v437 = vsel %vm420, %v309, 0
        %v439 = vsel %vm420, %v311, 0
        %v441 = vsel %vm420, %v313, 0
        %v443 = vsel %vm420, %v315, 0
        %v445 = vsel %vm420, %v317, 0
        %v447 = vsel %vm420, %v319, 0
        %v449 = vsel %vm420, %v321, 0
        %v451 = vsel %vm420, %v323, 0
        %v453 = vsel %vm420, %v357, 0
        %v455 = vsel %vm420, %v359, 0
        %v457 = vsel %vm420, %v361, 0
        %v459 = vsel %vm420, %v363, 0
        %v461 = vsel %vm420, %v365, 0
        %v463 = vsel %vm420, %v367, 0
        %v465 = vsel %vm420, %v369, 0
        %v467 = vsel %vm420, %v371, 0
        %v469 = vsel %vm420, %v373, 0
        %v471 = vsel %vm420, %v375, 0
        %v473 = vsel %vm420, %v377, 0
        %v475 = vsel %vm420, %v379, 0
        %v477 = vsel %vm420, %v381, 0
        %v479 = vsel %vm420, %v383, 0
        %v481 = vsel %vm420, %v385, 0
        %v483 = vsel %vm420, %v387, 0
        %v485 = vsel %vm420, %v389, 0
        %v487 = vsel %vm420, %v391, 0
        %v489 = vsel %vm420, %v393, 0
        %v491 = vsel %vm420, %v395, 0
        %v493 = vsel %vm420, %v397, 0
        %v495 = vsel %vm420, %v399, 0
        %v497 = vsel %vm420, %v401, 0
        %v499 = vsel %vm420, %v403, 0
        %v501 = vsel %vm420, %v405, 0
        %v503 = vsel %vm420, %v407, 0
        %v505 = vsel %vm420, %v409, 0
        %v507 = vsel %vm420, %v411, 0
        %v509 = vsel %vm420, %v413, 0
        %v511 = vsel %vm420, %v415, 0
        %v513 = vsel %vm420, %v417, 0
        %v515 = vsel %vm420, %v419, 0
        %517 = vmatprep.subr.mxu0 0.0
        %518 = vmatpush1.xpose.msra.mxu0 %v453
        %519 = vmatprep.subr.mxu0 0.0
        %520 = vmatpush1.xpose.msra.mxu0 %v455
        %521 = vmatprep.subr.mxu0 0.0
        %522 = vmatpush1.xpose.msra.mxu0 %v457
        %523 = vmatprep.subr.mxu0 0.0
        %524 = vmatpush1.xpose.msra.mxu0 %v459
        %525 = vmatprep.subr.mxu0 0.0
        %526 = vmatpush1.xpose.msra.mxu0 %v461
        %527 = vmatprep.subr.mxu0 0.0
        %528 = vmatpush1.xpose.msra.mxu0 %v463
        %529 = vmatprep.subr.mxu0 0.0
        %530 = vmatpush1.xpose.msra.mxu0 %v465
        %531 = vmatprep.subr.mxu0 0.0
        %532 = vmatpush1.xpose.msra.mxu0 %v467
        %533 = vmatprep.subr.mxu0 0.0
        %534 = vmatpush1.xpose.msra.mxu0 %v469
        %535 = vmatprep.subr.mxu0 0.0
        %536 = vmatpush1.xpose.msra.mxu0 %v471
        %537 = vmatprep.subr.mxu0 0.0
        %538 = vmatpush1.xpose.msra.mxu0 %v473
        %539 = vmatprep.subr.mxu0 0.0
        %540 = vmatpush1.xpose.msra.mxu0 %v475
        %541 = vmatprep.subr.mxu0 0.0
        %542 = vmatpush1.xpose.msra.mxu0 %v477
        %543 = vmatprep.subr.mxu0 0.0
        %544 = vmatpush1.xpose.msra.mxu0 %v479
        %545 = vmatprep.subr.mxu0 0.0
        %546 = vmatpush1.xpose.msra.mxu0 %v481
        %547 = vmatprep.subr.mxu0 0.0
        %548 = vmatpush1.xpose.msra.mxu0 %v483
        %549 = vmatprep.subr.mxu0 0.0
        %550 = vmatpush1.xpose.msra.mxu0 %v485
        %551 = vmatprep.subr.mxu0 0.0
        %552 = vmatpush1.xpose.msra.mxu0 %v487
        %553 = vmatprep.subr.mxu0 0.0
        %554 = vmatpush1.xpose.msra.mxu0 %v489
        %555 = vmatprep.subr.mxu0 0.0
        %556 = vmatpush1.xpose.msra.mxu0 %v491
        %557 = vmatprep.subr.mxu0 0.0
        %558 = vmatpush1.xpose.msra.mxu0 %v493
        %559 = vmatprep.subr.mxu0 0.0
        %560 = vmatpush1.xpose.msra.mxu0 %v495
        %561 = vmatprep.subr.mxu0 0.0
        %562 = vmatpush1.xpose.msra.mxu0 %v497
        %563 = vmatprep.subr.mxu0 0.0
        %564 = vmatpush1.xpose.msra.mxu0 %v499
        %565 = vmatprep.subr.mxu0 0.0
        %566 = vmatpush1.xpose.msra.mxu0 %v501
        %567 = vmatprep.subr.mxu0 0.0
        %568 = vmatpush1.xpose.msra.mxu0 %v503
        %569 = vmatprep.subr.mxu0 0.0
        %570 = vmatpush1.xpose.msra.mxu0 %v505
        %571 = vmatprep.subr.mxu0 0.0
        %572 = vmatpush1.xpose.msra.mxu0 %v507
        %573 = vmatprep.subr.mxu0 0.0
        %574 = vmatpush1.xpose.msra.mxu0 %v509
        %575 = vmatprep.subr.mxu0 0.0
        %576 = vmatpush1.xpose.msra.mxu0 %v511
        %577 = vmatprep.subr.mxu0 0.0
        %578 = vmatpush1.xpose.msra.mxu0 %v513
        %579 = vmatprep.subr.mxu0 0.0
        %580 = vmatpush1.xpose.msra.mxu0 %v515
        %581 = vmatprep.mubr.f32.mxu0 0.0
        %582 = vmatmul.mubr.f32.gmra.mrb[0].mxu0 %v421
        %v583 = vpop.f32.mrb[0].mxu0
        %v584 = vadd.f32 0.0, %v583
        %v585 = vpop.f32.mrb[0].mxu0
        %v586 = vadd.f32 0.0, %v585
        %587 = vmatprep.mubr.f32.mxu0 0.0
        %588 = vmatmul.mubr.f32.gmra.mrb[0].mxu0 %v423
        %v589 = vpop.f32.mrb[0].mxu0
        %v590 = vadd.f32 0.0, %v589
        %v591 = vpop.f32.mrb[0].mxu0
        %v592 = vadd.f32 0.0, %v591
        %593 = vmatprep.mubr.f32.mxu0 0.0
        %594 = vmatmul.mubr.f32.gmra.mrb[0].mxu0 %v425
        %v595 = vpop.f32.mrb[0].mxu0
        %v596 = vadd.f32 0.0, %v595
        %v597 = vpop.f32.mrb[0].mxu0
        %v598 = vadd.f32 0.0, %v597
        %599 = vmatprep.mubr.f32.mxu0 0.0
        %600 = vmatmul.mubr.f32.gmra.mrb[0].mxu0 %v427
        %v601 = vpop.f32.mrb[0].mxu0
        %v602 = vadd.f32 0.0, %v601
        %v603 = vpop.f32.mrb[0].mxu0
        %v604 = vadd.f32 0.0, %v603
        %605 = vmatprep.mubr.f32.mxu0 0.0
        %606 = vmatmul.mubr.f32.gmra.mrb[0].mxu0 %v429
        %v607 = vpop.f32.mrb[0].mxu0
        %v608 = vadd.f32 0.0, %v607
        %v609 = vpop.f32.mrb[0].mxu0
        %v610 = vadd.f32 0.0, %v609
        %611 = vmatprep.mubr.f32.mxu0 0.0
        %612 = vmatmul.mubr.f32.gmra.mrb[0].mxu0 %v431
        %v613 = vpop.f32.mrb[0].mxu0
        %v614 = vadd.f32 0.0, %v613
        %v615 = vpop.f32.mrb[0].mxu0
        %v616 = vadd.f32 0.0, %v615
        %617 = vmatprep.mubr.f32.mxu0 0.0
        %618 = vmatmul.mubr.f32.gmra.mrb[0].mxu0 %v433
        %v619 = vpop.f32.mrb[0].mxu0
        %v620 = vadd.f32 0.0, %v619
        %v621 = vpop.f32.mrb[0].mxu0
        %v622 = vadd.f32 0.0, %v621
        %623 = vmatprep.mubr.f32.mxu0 0.0
        %624 = vmatmul.mubr.f32.gmra.mrb[0].mxu0 %v435
        %v625 = vpop.f32.mrb[0].mxu0
        %v626 = vadd.f32 0.0, %v625
        %v627 = vpop.f32.mrb[0].mxu0
        %v628 = vadd.f32 0.0, %v627
        %629 = vmatprep.mubr.f32.mxu0 0.0
        %630 = vmatmul.mubr.f32.gmra.mrb[0].mxu0 %v437
        %v631 = vpop.f32.mrb[0].mxu0
        %v632 = vadd.f32 0.0, %v631
        %v633 = vpop.f32.mrb[0].mxu0
        %v634 = vadd.f32 0.0, %v633
        %635 = vmatprep.mubr.f32.mxu0 0.0
        %636 = vmatmul.mubr.f32.gmra.mrb[0].mxu0 %v439
        %v637 = vpop.f32.mrb[0].mxu0
        %v638 = vadd.f32 0.0, %v637
        %v639 = vpop.f32.mrb[0].mxu0
        %v640 = vadd.f32 0.0, %v639
        %641 = vmatprep.mubr.f32.mxu0 0.0
        %642 = vmatmul.mubr.f32.gmra.mrb[0].mxu0 %v441
        %v643 = vpop.f32.mrb[0].mxu0
        %v644 = vadd.f32 0.0, %v643
        %v645 = vpop.f32.mrb[0].mxu0
        %v646 = vadd.f32 0.0, %v645
        %647 = vmatprep.mubr.f32.mxu0 0.0
        %648 = vmatmul.mubr.f32.gmra.mrb[0].mxu0 %v443
        %v649 = vpop.f32.mrb[0].mxu0
        %v650 = vadd.f32 0.0, %v649
        %v651 = vpop.f32.mrb[0].mxu0
        %v652 = vadd.f32 0.0, %v651
        %653 = vmatprep.mubr.f32.mxu0 0.0
        %654 = vmatmul.mubr.f32.gmra.mrb[0].mxu0 %v445
        %v655 = vpop.f32.mrb[0].mxu0
        %v656 = vadd.f32 0.0, %v655
        %v657 = vpop.f32.mrb[0].mxu0
        %v658 = vadd.f32 0.0, %v657
        %659 = vmatprep.mubr.f32.mxu0 0.0
        %660 = vmatmul.mubr.f32.gmra.mrb[0].mxu0 %v447
        %v661 = vpop.f32.mrb[0].mxu0
        %v662 = vadd.f32 0.0, %v661
        %v663 = vpop.f32.mrb[0].mxu0
        %v664 = vadd.f32 0.0, %v663
        %665 = vmatprep.mubr.f32.mxu0 0.0
        %666 = vmatmul.mubr.f32.gmra.mrb[0].mxu0 %v449
        %v667 = vpop.f32.mrb[0].mxu0
        %v668 = vadd.f32 0.0, %v667
        %v669 = vpop.f32.mrb[0].mxu0
        %v670 = vadd.f32 0.0, %v669
        %671 = vmatprep.mubr.f32.mxu0 0.0
        %672 = vmatmul.mubr.f32.gmra.mrb[0].mxu0 %v451
        %v673 = vpop.f32.mrb[0].mxu0
        %v674 = vadd.f32 0.0, %v673
        %v675 = vpop.f32.mrb[0].mxu0
        %v676 = vadd.f32 0.0, %v675
        %677 = vdwg.mxu0
        %v678 = vsel %vm420, %v228, 0
        %v680 = vsel %vm420, %v229, 0
        %v682 = vsel %vm420, %v230, 0
        %v684 = vsel %vm420, %v231, 0
        %v686 = vsel %vm420, %v232, 0
        %v688 = vsel %vm420, %v233, 0
        %v690 = vsel %vm420, %v234, 0
        %v692 = vsel %vm420, %v235, 0
        %v694 = vsel %vm420, %v236, 0
        %v696 = vsel %vm420, %v237, 0
        %v698 = vsel %vm420, %v238, 0
        %v700 = vsel %vm420, %v239, 0
        %v702 = vsel %vm420, %v240, 0
        %v704 = vsel %vm420, %v241, 0
        %v706 = vsel %vm420, %v242, 0
        %v708 = vsel %vm420, %v243, 0
        %v710 = vsel %vm420, %v244, 0
        %v712 = vsel %vm420, %v245, 0
        %v714 = vsel %vm420, %v246, 0
        %v716 = vsel %vm420, %v247, 0
        %v718 = vsel %vm420, %v248, 0
        %v720 = vsel %vm420, %v249, 0
        %v722 = vsel %vm420, %v250, 0
        %v724 = vsel %vm420, %v251, 0
        %v726 = vsel %vm420, %v252, 0
        %v728 = vsel %vm420, %v253, 0
        %v730 = vsel %vm420, %v254, 0
        %v732 = vsel %vm420, %v255, 0
        %v734 = vsel %vm420, %v256, 0
        %v736 = vsel %vm420, %v257, 0
        %v738 = vsel %vm420, %v258, 0
        %v740 = vsel %vm420, %v259, 0
        %v742 = vsel %vm420, %v260, 0
        %v744 = vsel %vm420, %v261, 0
        %v746 = vsel %vm420, %v262, 0
        %v748 = vsel %vm420, %v263, 0
        %v750 = vsel %vm420, %v264, 0
        %v752 = vsel %vm420, %v265, 0
        %v754 = vsel %vm420, %v266, 0
        %v756 = vsel %vm420, %v267, 0
        %v758 = vsel %vm420, %v268, 0
        %v760 = vsel %vm420, %v269, 0
        %v762 = vsel %vm420, %v270, 0
        %v764 = vsel %vm420, %v271, 0
        %v766 = vsel %vm420, %v272, 0
        %v768 = vsel %vm420, %v273, 0
        %v770 = vsel %vm420, %v274, 0
        %v772 = vsel %vm420, %v275, 0
        %774 = vmatprep.subr.mxu0 0.0
        %775 = vmatpush1.xpose.msra.mxu0 %v710
        %776 = vmatprep.subr.mxu0 0.0
        %777 = vmatpush1.xpose.msra.mxu0 %v712
        %778 = vmatprep.subr.mxu0 0.0
        %779 = vmatpush1.xpose.msra.mxu0 %v714
        %780 = vmatprep.subr.mxu0 0.0
        %781 = vmatpush1.xpose.msra.mxu0 %v716
        %782 = vmatprep.subr.mxu0 0.0
        %783 = vmatpush1.xpose.msra.mxu0 %v718
        %784 = vmatprep.subr.mxu0 0.0
        %785 = vmatpush1.xpose.msra.mxu0 %v720
        %786 = vmatprep.subr.mxu0 0.0
        %787 = vmatpush1.xpose.msra.mxu0 %v722
        %788 = vmatprep.subr.mxu0 0.0
        %789 = vmatpush1.xpose.msra.mxu0 %v724
        %790 = vmatprep.subr.mxu0 0.0
        %791 = vmatpush1.xpose.msra.mxu0 %v726
        %792 = vmatprep.subr.mxu0 0.0
        %793 = vmatpush1.xpose.msra.mxu0 %v728
        %794 = vmatprep.subr.mxu0 0.0
        %795 = vmatpush1.xpose.msra.mxu0 %v730
        %796 = vmatprep.subr.mxu0 0.0
        %797 = vmatpush1.xpose.msra.mxu0 %v732
        %798 = vmatprep.subr.mxu0 0.0
        %799 = vmatpush1.xpose.msra.mxu0 %v734
        %800 = vmatprep.subr.mxu0 0.0
        %801 = vmatpush1.xpose.msra.mxu0 %v736
        %802 = vmatprep.subr.mxu0 0.0
        %803 = vmatpush1.xpose.msra.mxu0 %v738
        %804 = vmatprep.subr.mxu0 0.0
        %805 = vmatpush1.xpose.msra.mxu0 %v740
        %806 = vmatprep.subr.mxu0 0.0
        %807 = vmatpush1.xpose.msra.mxu0 %v742
        %808 = vmatprep.subr.mxu0 0.0
        %809 = vmatpush1.xpose.msra.mxu0 %v744
        %810 = vmatprep.subr.mxu0 0.0
        %811 = vmatpush1.xpose.msra.mxu0 %v746
        %812 = vmatprep.subr.mxu0 0.0
        %813 = vmatpush1.xpose.msra.mxu0 %v748
        %814 = vmatprep.subr.mxu0 0.0
        %815 = vmatpush1.xpose.msra.mxu0 %v750
        %816 = vmatprep.subr.mxu0 0.0
        %817 = vmatpush1.xpose.msra.mxu0 %v752
        %818 = vmatprep.subr.mxu0 0.0
        %819 = vmatpush1.xpose.msra.mxu0 %v754
        %820 = vmatprep.subr.mxu0 0.0
        %821 = vmatpush1.xpose.msra.mxu0 %v756
        %822 = vmatprep.subr.mxu0 0.0
        %823 = vmatpush1.xpose.msra.mxu0 %v758
        %824 = vmatprep.subr.mxu0 0.0
        %825 = vmatpush1.xpose.msra.mxu0 %v760
        %826 = vmatprep.subr.mxu0 0.0
        %827 = vmatpush1.xpose.msra.mxu0 %v762
        %828 = vmatprep.subr.mxu0 0.0
        %829 = vmatpush1.xpose.msra.mxu0 %v764
        %830 = vmatprep.subr.mxu0 0.0
        %831 = vmatpush1.xpose.msra.mxu0 %v766
        %832 = vmatprep.subr.mxu0 0.0
        %833 = vmatpush1.xpose.msra.mxu0 %v768
        %834 = vmatprep.subr.mxu0 0.0
        %835 = vmatpush1.xpose.msra.mxu0 %v770
        %836 = vmatprep.subr.mxu0 0.0
        %837 = vmatpush1.xpose.msra.mxu0 %v772
        %838 = vmatprep.mubr.f32.mxu0 0.0
        %839 = vmatmul.mubr.f32.gmra.mrb[0].mxu0 %v678
        %v840 = vpop.f32.mrb[0].mxu0
        %v841 = vadd.f32 %v584, %v840
        %v842 = vpop.f32.mrb[0].mxu0
        %v843 = vadd.f32 %v586, %v842
        %844 = vmatprep.mubr.f32.mxu0 0.0
        %845 = vmatmul.mubr.f32.gmra.mrb[0].mxu0 %v680
        %v846 = vpop.f32.mrb[0].mxu0
        %v847 = vadd.f32 %v590, %v846
        %v848 = vpop.f32.mrb[0].mxu0
        %v849 = vadd.f32 %v592, %v848
        %850 = vmatprep.mubr.f32.mxu0 0.0
        %851 = vmatmul.mubr.f32.gmra.mrb[0].mxu0 %v682
        %v852 = vpop.f32.mrb[0].mxu0
        %v853 = vadd.f32 %v596, %v852
        %v854 = vpop.f32.mrb[0].mxu0
        %v855 = vadd.f32 %v598, %v854
        %856 = vmatprep.mubr.f32.mxu0 0.0
        %857 = vmatmul.mubr.f32.gmra.mrb[0].mxu0 %v684
        %v858 = vpop.f32.mrb[0].mxu0
        %v859 = vadd.f32 %v602, %v858
        %v860 = vpop.f32.mrb[0].mxu0
        %v861 = vadd.f32 %v604, %v860
        %862 = vmatprep.mubr.f32.mxu0 0.0
        %863 = vmatmul.mubr.f32.gmra.mrb[0].mxu0 %v686
        %v864 = vpop.f32.mrb[0].mxu0
        %v865 = vadd.f32 %v608, %v864
        %v866 = vpop.f32.mrb[0].mxu0
        %v867 = vadd.f32 %v610, %v866
        %868 = vmatprep.mubr.f32.mxu0 0.0
        %869 = vmatmul.mubr.f32.gmra.mrb[0].mxu0 %v688
        %v870 = vpop.f32.mrb[0].mxu0
        %v871 = vadd.f32 %v614, %v870
        %v872 = vpop.f32.mrb[0].mxu0
        %v873 = vadd.f32 %v616, %v872
        %874 = vmatprep.mubr.f32.mxu0 0.0
        %875 = vmatmul.mubr.f32.gmra.mrb[0].mxu0 %v690
        %v876 = vpop.f32.mrb[0].mxu0
        %v877 = vadd.f32 %v620, %v876
        %v878 = vpop.f32.mrb[0].mxu0
        %v879 = vadd.f32 %v622, %v878
        %880 = vmatprep.mubr.f32.mxu0 0.0
        %881 = vmatmul.mubr.f32.gmra.mrb[0].mxu0 %v692
        %v882 = vpop.f32.mrb[0].mxu0
        %v883 = vadd.f32 %v626, %v882
        %v884 = vpop.f32.mrb[0].mxu0
        %v885 = vadd.f32 %v628, %v884
        %886 = vmatprep.mubr.f32.mxu0 0.0
        %887 = vmatmul.mubr.f32.gmra.mrb[0].mxu0 %v694
        %v888 = vpop.f32.mrb[0].mxu0
        %v889 = vadd.f32 %v632, %v888
        %v890 = vpop.f32.mrb[0].mxu0
        %v891 = vadd.f32 %v634, %v890
        %892 = vmatprep.mubr.f32.mxu0 0.0
        %893 = vmatmul.mubr.f32.gmra.mrb[0].mxu0 %v696
        %v894 = vpop.f32.mrb[0].mxu0
        %v895 = vadd.f32 %v638, %v894
        %v896 = vpop.f32.mrb[0].mxu0
        %v897 = vadd.f32 %v640, %v896
        %898 = vmatprep.mubr.f32.mxu0 0.0
        %899 = vmatmul.mubr.f32.gmra.mrb[0].mxu0 %v698
        %v900 = vpop.f32.mrb[0].mxu0
        %v901 = vadd.f32 %v644, %v900
        %v902 = vpop.f32.mrb[0].mxu0
        %v903 = vadd.f32 %v646, %v902
        %904 = vmatprep.mubr.f32.mxu0 0.0
        %905 = vmatmul.mubr.f32.gmra.mrb[0].mxu0 %v700
        %v906 = vpop.f32.mrb[0].mxu0
        %v907 = vadd.f32 %v650, %v906
        %v908 = vpop.f32.mrb[0].mxu0
        %v909 = vadd.f32 %v652, %v908
        %910 = vmatprep.mubr.f32.mxu0 0.0
        %911 = vmatmul.mubr.f32.gmra.mrb[0].mxu0 %v702
        %v912 = vpop.f32.mrb[0].mxu0
        %v913 = vadd.f32 %v656, %v912
        %v914 = vpop.f32.mrb[0].mxu0
        %v915 = vadd.f32 %v658, %v914
        %916 = vmatprep.mubr.f32.mxu0 0.0
        %917 = vmatmul.mubr.f32.gmra.mrb[0].mxu0 %v704
        %v918 = vpop.f32.mrb[0].mxu0
        %v919 = vadd.f32 %v662, %v918
        %v920 = vpop.f32.mrb[0].mxu0
        %v921 = vadd.f32 %v664, %v920
        %922 = vmatprep.mubr.f32.mxu0 0.0
        %923 = vmatmul.mubr.f32.gmra.mrb[0].mxu0 %v706
        %v924 = vpop.f32.mrb[0].mxu0
        %v925 = vadd.f32 %v668, %v924
        %v926 = vpop.f32.mrb[0].mxu0
        %v927 = vadd.f32 %v670, %v926
        %928 = vmatprep.mubr.f32.mxu0 0.0
        %929 = vmatmul.mubr.f32.gmra.mrb[0].mxu0 %v708
        %v930 = vpop.f32.mrb[0].mxu0
        %v931 = vadd.f32 %v674, %v930
        %v932 = vpop.f32.mrb[0].mxu0
        %v933 = vadd.f32 %v676, %v932
        %934 = vdwg.mxu0
        %935 = vrot.lane.b32.xlu0 %v228, 116
        %v936 = vpop.permute.xlu0 %935
        %937 = vrot.lane.b32.xlu0 %v229, 116
        %v938 = vpop.permute.xlu0 %937
        %939 = vrot.lane.b32.xlu0 %v230, 116
        %v940 = vpop.permute.xlu0 %939
        %941 = vrot.lane.b32.xlu0 %v231, 116
        %v942 = vpop.permute.xlu0 %941
        %943 = vrot.lane.b32.xlu0 %v232, 116
        %v944 = vpop.permute.xlu0 %943
        %945 = vrot.lane.b32.xlu0 %v233, 116
        %v946 = vpop.permute.xlu0 %945
        %947 = vrot.lane.b32.xlu0 %v234, 116
        %v948 = vpop.permute.xlu0 %947
        %949 = vrot.lane.b32.xlu0 %v235, 116
        %v950 = vpop.permute.xlu0 %949
        %951 = vrot.lane.b32.xlu0 %v236, 116
        %v952 = vpop.permute.xlu0 %951
        %953 = vrot.lane.b32.xlu0 %v237, 116
        %v954 = vpop.permute.xlu0 %953
        %955 = vrot.lane.b32.xlu0 %v238, 116
        %v956 = vpop.permute.xlu0 %955
        %957 = vrot.lane.b32.xlu0 %v239, 116
        %v958 = vpop.permute.xlu0 %957
        %959 = vrot.lane.b32.xlu0 %v240, 116
        %v960 = vpop.permute.xlu0 %959
        %961 = vrot.lane.b32.xlu0 %v241, 116
        %v962 = vpop.permute.xlu0 %961
        %963 = vrot.lane.b32.xlu0 %v242, 116
        %v964 = vpop.permute.xlu0 %963
        %965 = vrot.lane.b32.xlu0 %v243, 116
        %v966 = vpop.permute.xlu0 %965
        %967 = vrot.lane.b32.xlu0 %v244, 122
        %v968 = vpop.permute.xlu0 %967
        %969 = vrot.lane.b32.xlu0 %v245, 122
        %v970 = vpop.permute.xlu0 %969
        %971 = vrot.lane.b32.xlu0 %v246, 122
        %v972 = vpop.permute.xlu0 %971
        %973 = vrot.lane.b32.xlu0 %v247, 122
        %v974 = vpop.permute.xlu0 %973
        %975 = vrot.lane.b32.xlu0 %v248, 122
        %v976 = vpop.permute.xlu0 %975
        %977 = vrot.lane.b32.xlu0 %v249, 122
        %v978 = vpop.permute.xlu0 %977
        %979 = vrot.lane.b32.xlu0 %v250, 122
        %v980 = vpop.permute.xlu0 %979
        %981 = vrot.lane.b32.xlu0 %v251, 122
        %v982 = vpop.permute.xlu0 %981
        %983 = vrot.lane.b32.xlu0 %v252, 122
        %v984 = vpop.permute.xlu0 %983
        %985 = vrot.lane.b32.xlu0 %v253, 122
        %v986 = vpop.permute.xlu0 %985
        %987 = vrot.lane.b32.xlu0 %v254, 122
        %v988 = vpop.permute.xlu0 %987
        %989 = vrot.lane.b32.xlu0 %v255, 122
        %v990 = vpop.permute.xlu0 %989
        %991 = vrot.lane.b32.xlu0 %v256, 122
        %v992 = vpop.permute.xlu0 %991
        %993 = vrot.lane.b32.xlu0 %v257, 122
        %v994 = vpop.permute.xlu0 %993
        %995 = vrot.lane.b32.xlu0 %v258, 122
        %v996 = vpop.permute.xlu0 %995
        %997 = vrot.lane.b32.xlu0 %v259, 122
        %v998 = vpop.permute.xlu0 %997
        %999 = vrot.lane.b32.xlu0 %v260, 122
        %v1000 = vpop.permute.xlu0 %999
        %1001 = vrot.lane.b32.xlu0 %v261, 122
        %v1002 = vpop.permute.xlu0 %1001
        %1003 = vrot.lane.b32.xlu0 %v262, 122
        %v1004 = vpop.permute.xlu0 %1003
        %1005 = vrot.lane.b32.xlu0 %v263, 122
        %v1006 = vpop.permute.xlu0 %1005
        %1007 = vrot.lane.b32.xlu0 %v264, 122
        %v1008 = vpop.permute.xlu0 %1007
        %1009 = vrot.lane.b32.xlu0 %v265, 122
        %v1010 = vpop.permute.xlu0 %1009
        %1011 = vrot.lane.b32.xlu0 %v266, 122
        %v1012 = vpop.permute.xlu0 %1011
        %1013 = vrot.lane.b32.xlu0 %v267, 122
        %v1014 = vpop.permute.xlu0 %1013
        %1015 = vrot.lane.b32.xlu0 %v268, 122
        %v1016 = vpop.permute.xlu0 %1015
        %1017 = vrot.lane.b32.xlu0 %v269, 122
        %v1018 = vpop.permute.xlu0 %1017
        %1019 = vrot.lane.b32.xlu0 %v270, 122
        %v1020 = vpop.permute.xlu0 %1019
        %1021 = vrot.lane.b32.xlu0 %v271, 122
        %v1022 = vpop.permute.xlu0 %1021
        %1023 = vrot.lane.b32.xlu0 %v272, 122
        %v1024 = vpop.permute.xlu0 %1023
        %1025 = vrot.lane.b32.xlu0 %v273, 122
        %v1026 = vpop.permute.xlu0 %1025
        %1027 = vrot.lane.b32.xlu0 %v274, 122
        %v1028 = vpop.permute.xlu0 %1027
        %1029 = vrot.lane.b32.xlu0 %v275, 122
        %v1030 = vpop.permute.xlu0 %1029
        %v1031 = vsel %vm420, %v936, 0
        %v1033 = vsel %vm420, %v938, 0
        %v1035 = vsel %vm420, %v940, 0
        %v1037 = vsel %vm420, %v942, 0
        %v1039 = vsel %vm420, %v944, 0
        %v1041 = vsel %vm420, %v946, 0
        %v1043 = vsel %vm420, %v948, 0
        %v1045 = vsel %vm420, %v950, 0
        %v1047 = vsel %vm420, %v952, 0
        %v1049 = vsel %vm420, %v954, 0
        %v1051 = vsel %vm420, %v956, 0
        %v1053 = vsel %vm420, %v958, 0
        %v1055 = vsel %vm420, %v960, 0
        %v1057 = vsel %vm420, %v962, 0
        %v1059 = vsel %vm420, %v964, 0
        %v1061 = vsel %vm420, %v966, 0
        %v1063 = vsel %vm420, %v968, 0
        %v1065 = vsel %vm420, %v970, 0
        %v1067 = vsel %vm420, %v972, 0
        %v1069 = vsel %vm420, %v974, 0
        %v1071 = vsel %vm420, %v976, 0
        %v1073 = vsel %vm420, %v978, 0
        %v1075 = vsel %vm420, %v980, 0
        %v1077 = vsel %vm420, %v982, 0
        %v1079 = vsel %vm420, %v984, 0
        %v1081 = vsel %vm420, %v986, 0
        %v1083 = vsel %vm420, %v988, 0
        %v1085 = vsel %vm420, %v990, 0
        %v1087 = vsel %vm420, %v992, 0
        %v1089 = vsel %vm420, %v994, 0
        %v1091 = vsel %vm420, %v996, 0
        %v1093 = vsel %vm420, %v998, 0
        %v1095 = vsel %vm420, %v1000, 0
        %v1097 = vsel %vm420, %v1002, 0
        %v1099 = vsel %vm420, %v1004, 0
        %v1101 = vsel %vm420, %v1006, 0
        %v1103 = vsel %vm420, %v1008, 0
        %v1105 = vsel %vm420, %v1010, 0
        %v1107 = vsel %vm420, %v1012, 0
        %v1109 = vsel %vm420, %v1014, 0
        %v1111 = vsel %vm420, %v1016, 0
        %v1113 = vsel %vm420, %v1018, 0
        %v1115 = vsel %vm420, %v1020, 0
        %v1117 = vsel %vm420, %v1022, 0
        %v1119 = vsel %vm420, %v1024, 0
        %v1121 = vsel %vm420, %v1026, 0
        %v1123 = vsel %vm420, %v1028, 0
        %v1125 = vsel %vm420, %v1030, 0
        %1127 = vmatprep.subr.mxu0 0.0
        %1128 = vmatpush1.xpose.msra.mxu0 %v1063
        %1129 = vmatprep.subr.mxu0 0.0
        %1130 = vmatpush1.xpose.msra.mxu0 %v1065
        %1131 = vmatprep.subr.mxu0 0.0
        %1132 = vmatpush1.xpose.msra.mxu0 %v1067
        %1133 = vmatprep.subr.mxu0 0.0
        %1134 = vmatpush1.xpose.msra.mxu0 %v1069
        %1135 = vmatprep.subr.mxu0 0.0
        %1136 = vmatpush1.xpose.msra.mxu0 %v1071
        %1137 = vmatprep.subr.mxu0 0.0
        %1138 = vmatpush1.xpose.msra.mxu0 %v1073
        %1139 = vmatprep.subr.mxu0 0.0
        %1140 = vmatpush1.xpose.msra.mxu0 %v1075
        %1141 = vmatprep.subr.mxu0 0.0
        %1142 = vmatpush1.xpose.msra.mxu0 %v1077
        %1143 = vmatprep.subr.mxu0 0.0
        %1144 = vmatpush1.xpose.msra.mxu0 %v1079
        %1145 = vmatprep.subr.mxu0 0.0
        %1146 = vmatpush1.xpose.msra.mxu0 %v1081
        %1147 = vmatprep.subr.mxu0 0.0
        %1148 = vmatpush1.xpose.msra.mxu0 %v1083
        %1149 = vmatprep.subr.mxu0 0.0
        %1150 = vmatpush1.xpose.msra.mxu0 %v1085
        %1151 = vmatprep.subr.mxu0 0.0
        %1152 = vmatpush1.xpose.msra.mxu0 %v1087
        %1153 = vmatprep.subr.mxu0 0.0
        %1154 = vmatpush1.xpose.msra.mxu0 %v1089
        %1155 = vmatprep.subr.mxu0 0.0
        %1156 = vmatpush1.xpose.msra.mxu0 %v1091
        %1157 = vmatprep.subr.mxu0 0.0
        %1158 = vmatpush1.xpose.msra.mxu0 %v1093
        %1159 = vmatprep.subr.mxu0 0.0
        %1160 = vmatpush1.xpose.msra.mxu0 %v1095
        %1161 = vmatprep.subr.mxu0 0.0
        %1162 = vmatpush1.xpose.msra.mxu0 %v1097
        %1163 = vmatprep.subr.mxu0 0.0
        %1164 = vmatpush1.xpose.msra.mxu0 %v1099
        %1165 = vmatprep.subr.mxu0 0.0
        %1166 = vmatpush1.xpose.msra.mxu0 %v1101
        %1167 = vmatprep.subr.mxu0 0.0
        %1168 = vmatpush1.xpose.msra.mxu0 %v1103
        %1169 = vmatprep.subr.mxu0 0.0
        %1170 = vmatpush1.xpose.msra.mxu0 %v1105
        %1171 = vmatprep.subr.mxu0 0.0
        %1172 = vmatpush1.xpose.msra.mxu0 %v1107
        %1173 = vmatprep.subr.mxu0 0.0
        %1174 = vmatpush1.xpose.msra.mxu0 %v1109
        %1175 = vmatprep.subr.mxu0 0.0
        %1176 = vmatpush1.xpose.msra.mxu0 %v1111
        %1177 = vmatprep.subr.mxu0 0.0
        %1178 = vmatpush1.xpose.msra.mxu0 %v1113
        %1179 = vmatprep.subr.mxu0 0.0
        %1180 = vmatpush1.xpose.msra.mxu0 %v1115
        %1181 = vmatprep.subr.mxu0 0.0
        %1182 = vmatpush1.xpose.msra.mxu0 %v1117
        %1183 = vmatprep.subr.mxu0 0.0
        %1184 = vmatpush1.xpose.msra.mxu0 %v1119
        %1185 = vmatprep.subr.mxu0 0.0
        %1186 = vmatpush1.xpose.msra.mxu0 %v1121
        %1187 = vmatprep.subr.mxu0 0.0
        %1188 = vmatpush1.xpose.msra.mxu0 %v1123
        %1189 = vmatprep.subr.mxu0 0.0
        %1190 = vmatpush1.xpose.msra.mxu0 %v1125
        %1191 = vmatprep.mubr.f32.mxu0 0.0
        %1192 = vmatmul.mubr.f32.gmra.mrb[0].mxu0 %v1031
        %v1193 = vpop.f32.mrb[0].mxu0
        %v1194 = vadd.f32 0.0, %v1193
        %v1195 = vpop.f32.mrb[0].mxu0
        %v1196 = vadd.f32 0.0, %v1195
        %1197 = vmatprep.mubr.f32.mxu0 0.0
        %1198 = vmatmul.mubr.f32.gmra.mrb[0].mxu0 %v1033
        %v1199 = vpop.f32.mrb[0].mxu0
        %v1200 = vadd.f32 0.0, %v1199
        %v1201 = vpop.f32.mrb[0].mxu0
        %v1202 = vadd.f32 0.0, %v1201
        %1203 = vmatprep.mubr.f32.mxu0 0.0
        %1204 = vmatmul.mubr.f32.gmra.mrb[0].mxu0 %v1035
        %v1205 = vpop.f32.mrb[0].mxu0
        %v1206 = vadd.f32 0.0, %v1205
        %v1207 = vpop.f32.mrb[0].mxu0
        %v1208 = vadd.f32 0.0, %v1207
        %1209 = vmatprep.mubr.f32.mxu0 0.0
        %1210 = vmatmul.mubr.f32.gmra.mrb[0].mxu0 %v1037
        %v1211 = vpop.f32.mrb[0].mxu0
        %v1212 = vadd.f32 0.0, %v1211
        %v1213 = vpop.f32.mrb[0].mxu0
        %v1214 = vadd.f32 0.0, %v1213
        %1215 = vmatprep.mubr.f32.mxu0 0.0
        %1216 = vmatmul.mubr.f32.gmra.mrb[0].mxu0 %v1039
        %v1217 = vpop.f32.mrb[0].mxu0
        %v1218 = vadd.f32 0.0, %v1217
        %v1219 = vpop.f32.mrb[0].mxu0
        %v1220 = vadd.f32 0.0, %v1219
        %1221 = vmatprep.mubr.f32.mxu0 0.0
        %1222 = vmatmul.mubr.f32.gmra.mrb[0].mxu0 %v1041
        %v1223 = vpop.f32.mrb[0].mxu0
        %v1224 = vadd.f32 0.0, %v1223
        %v1225 = vpop.f32.mrb[0].mxu0
        %v1226 = vadd.f32 0.0, %v1225
        %1227 = vmatprep.mubr.f32.mxu0 0.0
        %1228 = vmatmul.mubr.f32.gmra.mrb[0].mxu0 %v1043
        %v1229 = vpop.f32.mrb[0].mxu0
        %v1230 = vadd.f32 0.0, %v1229
        %v1231 = vpop.f32.mrb[0].mxu0
        %v1232 = vadd.f32 0.0, %v1231
        %1233 = vmatprep.mubr.f32.mxu0 0.0
        %1234 = vmatmul.mubr.f32.gmra.mrb[0].mxu0 %v1045
        %v1235 = vpop.f32.mrb[0].mxu0
        %v1236 = vadd.f32 0.0, %v1235
        %v1237 = vpop.f32.mrb[0].mxu0
        %v1238 = vadd.f32 0.0, %v1237
        %1239 = vmatprep.mubr.f32.mxu0 0.0
        %1240 = vmatmul.mubr.f32.gmra.mrb[0].mxu0 %v1047
        %v1241 = vpop.f32.mrb[0].mxu0
        %v1242 = vadd.f32 0.0, %v1241
        %v1243 = vpop.f32.mrb[0].mxu0
        %v1244 = vadd.f32 0.0, %v1243
        %1245 = vmatprep.mubr.f32.mxu0 0.0
        %1246 = vmatmul.mubr.f32.gmra.mrb[0].mxu0 %v1049
        %v1247 = vpop.f32.mrb[0].mxu0
        %v1248 = vadd.f32 0.0, %v1247
        %v1249 = vpop.f32.mrb[0].mxu0
        %v1250 = vadd.f32 0.0, %v1249
        %1251 = vmatprep.mubr.f32.mxu0 0.0
        %1252 = vmatmul.mubr.f32.gmra.mrb[0].mxu0 %v1051
        %v1253 = vpop.f32.mrb[0].mxu0
        %v1254 = vadd.f32 0.0, %v1253
        %v1255 = vpop.f32.mrb[0].mxu0
        %v1256 = vadd.f32 0.0, %v1255
        %1257 = vmatprep.mubr.f32.mxu0 0.0
        %1258 = vmatmul.mubr.f32.gmra.mrb[0].mxu0 %v1053
        %v1259 = vpop.f32.mrb[0].mxu0
        %v1260 = vadd.f32 0.0, %v1259
        %v1261 = vpop.f32.mrb[0].mxu0
        %v1262 = vadd.f32 0.0, %v1261
        %1263 = vmatprep.mubr.f32.mxu0 0.0
        %1264 = vmatmul.mubr.f32.gmra.mrb[0].mxu0 %v1055
        %v1265 = vpop.f32.mrb[0].mxu0
        %v1266 = vadd.f32 0.0, %v1265
        %v1267 = vpop.f32.mrb[0].mxu0
        %v1268 = vadd.f32 0.0, %v1267
        %1269 = vmatprep.mubr.f32.mxu0 0.0
        %1270 = vmatmul.mubr.f32.gmra.mrb[0].mxu0 %v1057
        %v1271 = vpop.f32.mrb[0].mxu0
        %v1272 = vadd.f32 0.0, %v1271
        %v1273 = vpop.f32.mrb[0].mxu0
        %v1274 = vadd.f32 0.0, %v1273
        %1275 = vmatprep.mubr.f32.mxu0 0.0
        %1276 = vmatmul.mubr.f32.gmra.mrb[0].mxu0 %v1059
        %v1277 = vpop.f32.mrb[0].mxu0
        %v1278 = vadd.f32 0.0, %v1277
        %v1279 = vpop.f32.mrb[0].mxu0
        %v1280 = vadd.f32 0.0, %v1279
        %1281 = vmatprep.mubr.f32.mxu0 0.0
        %1282 = vmatmul.mubr.f32.gmra.mrb[0].mxu0 %v1061
        %v1283 = vpop.f32.mrb[0].mxu0
        %v1284 = vadd.f32 0.0, %v1283
        %v1285 = vpop.f32.mrb[0].mxu0
        %v1286 = vadd.f32 0.0, %v1285
        %1287 = vdwg.mxu0
        %v1288 = vadd.f32 %v841, %v1194
        %v1289 = vadd.f32 %v843, %v1196
        %v1290 = vadd.f32 %v847, %v1200
        %v1291 = vadd.f32 %v849, %v1202
        %v1292 = vadd.f32 %v853, %v1206
        %v1293 = vadd.f32 %v855, %v1208
        %v1294 = vadd.f32 %v859, %v1212
        %v1295 = vadd.f32 %v861, %v1214
        %v1296 = vadd.f32 %v865, %v1218
        %v1297 = vadd.f32 %v867, %v1220
        %v1298 = vadd.f32 %v871, %v1224
        %v1299 = vadd.f32 %v873, %v1226
        %v1300 = vadd.f32 %v877, %v1230
        %v1301 = vadd.f32 %v879, %v1232
        %v1302 = vadd.f32 %v883, %v1236
        %v1303 = vadd.f32 %v885, %v1238
        %v1304 = vadd.f32 %v889, %v1242
        %v1305 = vadd.f32 %v891, %v1244
        %v1306 = vadd.f32 %v895, %v1248
        %v1307 = vadd.f32 %v897, %v1250
        %v1308 = vadd.f32 %v901, %v1254
        %v1309 = vadd.f32 %v903, %v1256
        %v1310 = vadd.f32 %v907, %v1260
        %v1311 = vadd.f32 %v909, %v1262
        %v1312 = vadd.f32 %v913, %v1266
        %v1313 = vadd.f32 %v915, %v1268
        %v1314 = vadd.f32 %v919, %v1272
        %v1315 = vadd.f32 %v921, %v1274
        %v1316 = vadd.f32 %v925, %v1278
        %v1317 = vadd.f32 %v927, %v1280
        %v1318 = vadd.f32 %v931, %v1284
        %v1319 = vadd.f32 %v933, %v1286
        %1320 = vrot.lane.b32.xlu0 %v228, 110
        %v1321 = vpop.permute.xlu0 %1320
        %1322 = vrot.lane.b32.xlu0 %v229, 110
        %v1323 = vpop.permute.xlu0 %1322
        %1324 = vrot.lane.b32.xlu0 %v230, 110
        %v1325 = vpop.permute.xlu0 %1324
        %1326 = vrot.lane.b32.xlu0 %v231, 110
        %v1327 = vpop.permute.xlu0 %1326
        %1328 = vrot.lane.b32.xlu0 %v232, 110
        %v1329 = vpop.permute.xlu0 %1328
        %1330 = vrot.lane.b32.xlu0 %v233, 110
        %v1331 = vpop.permute.xlu0 %1330
        %1332 = vrot.lane.b32.xlu0 %v234, 110
        %v1333 = vpop.permute.xlu0 %1332
        %1334 = vrot.lane.b32.xlu0 %v235, 110
        %v1335 = vpop.permute.xlu0 %1334
        %1336 = vrot.lane.b32.xlu0 %v236, 110
        %v1337 = vpop.permute.xlu0 %1336
        %1338 = vrot.lane.b32.xlu0 %v237, 110
        %v1339 = vpop.permute.xlu0 %1338
        %1340 = vrot.lane.b32.xlu0 %v238, 110
        %v1341 = vpop.permute.xlu0 %1340
        %1342 = vrot.lane.b32.xlu0 %v239, 110
        %v1343 = vpop.permute.xlu0 %1342
        %1344 = vrot.lane.b32.xlu0 %v240, 110
        %v1345 = vpop.permute.xlu0 %1344
        %1346 = vrot.lane.b32.xlu0 %v241, 110
        %v1347 = vpop.permute.xlu0 %1346
        %1348 = vrot.lane.b32.xlu0 %v242, 110
        %v1349 = vpop.permute.xlu0 %1348
        %1350 = vrot.lane.b32.xlu0 %v243, 110
        %v1351 = vpop.permute.xlu0 %1350
        %1352 = vrot.lane.b32.xlu0 %v244, 119
        %v1353 = vpop.permute.xlu0 %1352
        %1354 = vrot.lane.b32.xlu0 %v245, 119
        %v1355 = vpop.permute.xlu0 %1354
        %1356 = vrot.lane.b32.xlu0 %v246, 119
        %v1357 = vpop.permute.xlu0 %1356
        %1358 = vrot.lane.b32.xlu0 %v247, 119
        %v1359 = vpop.permute.xlu0 %1358
        %1360 = vrot.lane.b32.xlu0 %v248, 119
        %v1361 = vpop.permute.xlu0 %1360
        %1362 = vrot.lane.b32.xlu0 %v249, 119
        %v1363 = vpop.permute.xlu0 %1362
        %1364 = vrot.lane.b32.xlu0 %v250, 119
        %v1365 = vpop.permute.xlu0 %1364
        %1366 = vrot.lane.b32.xlu0 %v251, 119
        %v1367 = vpop.permute.xlu0 %1366
        %1368 = vrot.lane.b32.xlu0 %v252, 119
        %v1369 = vpop.permute.xlu0 %1368
        %1370 = vrot.lane.b32.xlu0 %v253, 119
        %v1371 = vpop.permute.xlu0 %1370
        %1372 = vrot.lane.b32.xlu0 %v254, 119
        %v1373 = vpop.permute.xlu0 %1372
        %1374 = vrot.lane.b32.xlu0 %v255, 119
        %v1375 = vpop.permute.xlu0 %1374
        %1376 = vrot.lane.b32.xlu0 %v256, 119
        %v1377 = vpop.permute.xlu0 %1376
        %1378 = vrot.lane.b32.xlu0 %v257, 119
        %v1379 = vpop.permute.xlu0 %1378
        %1380 = vrot.lane.b32.xlu0 %v258, 119
        %v1381 = vpop.permute.xlu0 %1380
        %1382 = vrot.lane.b32.xlu0 %v259, 119
        %v1383 = vpop.permute.xlu0 %1382
        %1384 = vrot.lane.b32.xlu0 %v260, 119
        %v1385 = vpop.permute.xlu0 %1384
        %1386 = vrot.lane.b32.xlu0 %v261, 119
        %v1387 = vpop.permute.xlu0 %1386
        %1388 = vrot.lane.b32.xlu0 %v262, 119
        %v1389 = vpop.permute.xlu0 %1388
        %1390 = vrot.lane.b32.xlu0 %v263, 119
        %v1391 = vpop.permute.xlu0 %1390
        %1392 = vrot.lane.b32.xlu0 %v264, 119
        %v1393 = vpop.permute.xlu0 %1392
        %1394 = vrot.lane.b32.xlu0 %v265, 119
        %v1395 = vpop.permute.xlu0 %1394
        %1396 = vrot.lane.b32.xlu0 %v266, 119
        %v1397 = vpop.permute.xlu0 %1396
        %1398 = vrot.lane.b32.xlu0 %v267, 119
        %v1399 = vpop.permute.xlu0 %1398
        %1400 = vrot.lane.b32.xlu0 %v268, 119
        %v1401 = vpop.permute.xlu0 %1400
        %1402 = vrot.lane.b32.xlu0 %v269, 119
        %v1403 = vpop.permute.xlu0 %1402
        %1404 = vrot.lane.b32.xlu0 %v270, 119
        %v1405 = vpop.permute.xlu0 %1404
        %1406 = vrot.lane.b32.xlu0 %v271, 119
        %v1407 = vpop.permute.xlu0 %1406
        %1408 = vrot.lane.b32.xlu0 %v272, 119
        %v1409 = vpop.permute.xlu0 %1408
        %1410 = vrot.lane.b32.xlu0 %v273, 119
        %v1411 = vpop.permute.xlu0 %1410
        %1412 = vrot.lane.b32.xlu0 %v274, 119
        %v1413 = vpop.permute.xlu0 %1412
        %1414 = vrot.lane.b32.xlu0 %v275, 119
        %v1415 = vpop.permute.xlu0 %1414
        %v1416 = vsel %vm420, %v1321, 0
        %v1418 = vsel %vm420, %v1323, 0
        %v1420 = vsel %vm420, %v1325, 0
        %v1422 = vsel %vm420, %v1327, 0
        %v1424 = vsel %vm420, %v1329, 0
        %v1426 = vsel %vm420, %v1331, 0
        %v1428 = vsel %vm420, %v1333, 0
        %v1430 = vsel %vm420, %v1335, 0
        %v1432 = vsel %vm420, %v1337, 0
        %v1434 = vsel %vm420, %v1339, 0
        %v1436 = vsel %vm420, %v1341, 0
        %v1438 = vsel %vm420, %v1343, 0
        %v1440 = vsel %vm420, %v1345, 0
        %v1442 = vsel %vm420, %v1347, 0
        %v1444 = vsel %vm420, %v1349, 0
        %v1446 = vsel %vm420, %v1351, 0
        %v1448 = vsel %vm420, %v1353, 0
        %v1450 = vsel %vm420, %v1355, 0
        %v1452 = vsel %vm420, %v1357, 0
        %v1454 = vsel %vm420, %v1359, 0
        %v1456 = vsel %vm420, %v1361, 0
        %v1458 = vsel %vm420, %v1363, 0
        %v1460 = vsel %vm420, %v1365, 0
        %v1462 = vsel %vm420, %v1367, 0
        %v1464 = vsel %vm420, %v1369, 0
        %v1466 = vsel %vm420, %v1371, 0
        %v1468 = vsel %vm420, %v1373, 0
        %v1470 = vsel %vm420, %v1375, 0
        %v1472 = vsel %vm420, %v1377, 0
        %v1474 = vsel %vm420, %v1379, 0
        %v1476 = vsel %vm420, %v1381, 0
        %v1478 = vsel %vm420, %v1383, 0
        %v1480 = vsel %vm420, %v1385, 0
        %v1482 = vsel %vm420, %v1387, 0
        %v1484 = vsel %vm420, %v1389, 0
        %v1486 = vsel %vm420, %v1391, 0
        %v1488 = vsel %vm420, %v1393, 0
        %v1490 = vsel %vm420, %v1395, 0
        %v1492 = vsel %vm420, %v1397, 0
        %v1494 = vsel %vm420, %v1399, 0
        %v1496 = vsel %vm420, %v1401, 0
        %v1498 = vsel %vm420, %v1403, 0
        %v1500 = vsel %vm420, %v1405, 0
        %v1502 = vsel %vm420, %v1407, 0
        %v1504 = vsel %vm420, %v1409, 0
        %v1506 = vsel %vm420, %v1411, 0
        %v1508 = vsel %vm420, %v1413, 0
        %v1510 = vsel %vm420, %v1415, 0
        %1512 = vmatprep.subr.mxu0 0.0
        %1513 = vmatpush1.xpose.msra.mxu0 %v1448
        %1514 = vmatprep.subr.mxu0 0.0
        %1515 = vmatpush1.xpose.msra.mxu0 %v1450
        %1516 = vmatprep.subr.mxu0 0.0
        %1517 = vmatpush1.xpose.msra.mxu0 %v1452
        %1518 = vmatprep.subr.mxu0 0.0
        %1519 = vmatpush1.xpose.msra.mxu0 %v1454
        %1520 = vmatprep.subr.mxu0 0.0
        %1521 = vmatpush1.xpose.msra.mxu0 %v1456
        %1522 = vmatprep.subr.mxu0 0.0
        %1523 = vmatpush1.xpose.msra.mxu0 %v1458
        %1524 = vmatprep.subr.mxu0 0.0
        %1525 = vmatpush1.xpose.msra.mxu0 %v1460
        %1526 = vmatprep.subr.mxu0 0.0
        %1527 = vmatpush1.xpose.msra.mxu0 %v1462
        %1528 = vmatprep.subr.mxu0 0.0
        %1529 = vmatpush1.xpose.msra.mxu0 %v1464
        %1530 = vmatprep.subr.mxu0 0.0
        %1531 = vmatpush1.xpose.msra.mxu0 %v1466
        %1532 = vmatprep.subr.mxu0 0.0
        %1533 = vmatpush1.xpose.msra.mxu0 %v1468
        %1534 = vmatprep.subr.mxu0 0.0
        %1535 = vmatpush1.xpose.msra.mxu0 %v1470
        %1536 = vmatprep.subr.mxu0 0.0
        %1537 = vmatpush1.xpose.msra.mxu0 %v1472
        %1538 = vmatprep.subr.mxu0 0.0
        %1539 = vmatpush1.xpose.msra.mxu0 %v1474
        %1540 = vmatprep.subr.mxu0 0.0
        %1541 = vmatpush1.xpose.msra.mxu0 %v1476
        %1542 = vmatprep.subr.mxu0 0.0
        %1543 = vmatpush1.xpose.msra.mxu0 %v1478
        %1544 = vmatprep.subr.mxu0 0.0
        %1545 = vmatpush1.xpose.msra.mxu0 %v1480
        %1546 = vmatprep.subr.mxu0 0.0
        %1547 = vmatpush1.xpose.msra.mxu0 %v1482
        %1548 = vmatprep.subr.mxu0 0.0
        %1549 = vmatpush1.xpose.msra.mxu0 %v1484
        %1550 = vmatprep.subr.mxu0 0.0
        %1551 = vmatpush1.xpose.msra.mxu0 %v1486
        %1552 = vmatprep.subr.mxu0 0.0
        %1553 = vmatpush1.xpose.msra.mxu0 %v1488
        %1554 = vmatprep.subr.mxu0 0.0
        %1555 = vmatpush1.xpose.msra.mxu0 %v1490
        %1556 = vmatprep.subr.mxu0 0.0
        %1557 = vmatpush1.xpose.msra.mxu0 %v1492
        %1558 = vmatprep.subr.mxu0 0.0
        %1559 = vmatpush1.xpose.msra.mxu0 %v1494
        %1560 = vmatprep.subr.mxu0 0.0
        %1561 = vmatpush1.xpose.msra.mxu0 %v1496
        %1562 = vmatprep.subr.mxu0 0.0
        %1563 = vmatpush1.xpose.msra.mxu0 %v1498
        %1564 = vmatprep.subr.mxu0 0.0
        %1565 = vmatpush1.xpose.msra.mxu0 %v1500
        %1566 = vmatprep.subr.mxu0 0.0
        %1567 = vmatpush1.xpose.msra.mxu0 %v1502
        %1568 = vmatprep.subr.mxu0 0.0
        %1569 = vmatpush1.xpose.msra.mxu0 %v1504
        %1570 = vmatprep.subr.mxu0 0.0
        %1571 = vmatpush1.xpose.msra.mxu0 %v1506
        %1572 = vmatprep.subr.mxu0 0.0
        %1573 = vmatpush1.xpose.msra.mxu0 %v1508
        %1574 = vmatprep.subr.mxu0 0.0
        %1575 = vmatpush1.xpose.msra.mxu0 %v1510
        %1576 = vmatprep.mubr.f32.mxu0 0.0
        %1577 = vmatmul.mubr.f32.gmra.mrb[0].mxu0 %v1416
        %v1578 = vpop.f32.mrb[0].mxu0
        %v1579 = vadd.f32 0.0, %v1578
        %v1580 = vpop.f32.mrb[0].mxu0
        %v1581 = vadd.f32 0.0, %v1580
        %1582 = vmatprep.mubr.f32.mxu0 0.0
        %1583 = vmatmul.mubr.f32.gmra.mrb[0].mxu0 %v1418
        %v1584 = vpop.f32.mrb[0].mxu0
        %v1585 = vadd.f32 0.0, %v1584
        %v1586 = vpop.f32.mrb[0].mxu0
        %v1587 = vadd.f32 0.0, %v1586
        %1588 = vmatprep.mubr.f32.mxu0 0.0
        %1589 = vmatmul.mubr.f32.gmra.mrb[0].mxu0 %v1420
        %v1590 = vpop.f32.mrb[0].mxu0
        %v1591 = vadd.f32 0.0, %v1590
        %v1592 = vpop.f32.mrb[0].mxu0
        %v1593 = vadd.f32 0.0, %v1592
        %1594 = vmatprep.mubr.f32.mxu0 0.0
        %1595 = vmatmul.mubr.f32.gmra.mrb[0].mxu0 %v1422
        %v1596 = vpop.f32.mrb[0].mxu0
        %v1597 = vadd.f32 0.0, %v1596
        %v1598 = vpop.f32.mrb[0].mxu0
        %v1599 = vadd.f32 0.0, %v1598
        %1600 = vmatprep.mubr.f32.mxu0 0.0
        %1601 = vmatmul.mubr.f32.gmra.mrb[0].mxu0 %v1424
        %v1602 = vpop.f32.mrb[0].mxu0
        %v1603 = vadd.f32 0.0, %v1602
        %v1604 = vpop.f32.mrb[0].mxu0
        %v1605 = vadd.f32 0.0, %v1604
        %1606 = vmatprep.mubr.f32.mxu0 0.0
        %1607 = vmatmul.mubr.f32.gmra.mrb[0].mxu0 %v1426
        %v1608 = vpop.f32.mrb[0].mxu0
        %v1609 = vadd.f32 0.0, %v1608
        %v1610 = vpop.f32.mrb[0].mxu0
        %v1611 = vadd.f32 0.0, %v1610
        %1612 = vmatprep.mubr.f32.mxu0 0.0
        %1613 = vmatmul.mubr.f32.gmra.mrb[0].mxu0 %v1428
        %v1614 = vpop.f32.mrb[0].mxu0
        %v1615 = vadd.f32 0.0, %v1614
        %v1616 = vpop.f32.mrb[0].mxu0
        %v1617 = vadd.f32 0.0, %v1616
        %1618 = vmatprep.mubr.f32.mxu0 0.0
        %1619 = vmatmul.mubr.f32.gmra.mrb[0].mxu0 %v1430
        %v1620 = vpop.f32.mrb[0].mxu0
        %v1621 = vadd.f32 0.0, %v1620
        %v1622 = vpop.f32.mrb[0].mxu0
        %v1623 = vadd.f32 0.0, %v1622
        %1624 = vmatprep.mubr.f32.mxu0 0.0
        %1625 = vmatmul.mubr.f32.gmra.mrb[0].mxu0 %v1432
        %v1626 = vpop.f32.mrb[0].mxu0
        %v1627 = vadd.f32 0.0, %v1626
        %v1628 = vpop.f32.mrb[0].mxu0
        %v1629 = vadd.f32 0.0, %v1628
        %1630 = vmatprep.mubr.f32.mxu0 0.0
        %1631 = vmatmul.mubr.f32.gmra.mrb[0].mxu0 %v1434
        %v1632 = vpop.f32.mrb[0].mxu0
        %v1633 = vadd.f32 0.0, %v1632
        %v1634 = vpop.f32.mrb[0].mxu0
        %v1635 = vadd.f32 0.0, %v1634
        %1636 = vmatprep.mubr.f32.mxu0 0.0
        %1637 = vmatmul.mubr.f32.gmra.mrb[0].mxu0 %v1436
        %v1638 = vpop.f32.mrb[0].mxu0
        %v1639 = vadd.f32 0.0, %v1638
        %v1640 = vpop.f32.mrb[0].mxu0
        %v1641 = vadd.f32 0.0, %v1640
        %1642 = vmatprep.mubr.f32.mxu0 0.0
        %1643 = vmatmul.mubr.f32.gmra.mrb[0].mxu0 %v1438
        %v1644 = vpop.f32.mrb[0].mxu0
        %v1645 = vadd.f32 0.0, %v1644
        %v1646 = vpop.f32.mrb[0].mxu0
        %v1647 = vadd.f32 0.0, %v1646
        %1648 = vmatprep.mubr.f32.mxu0 0.0
        %1649 = vmatmul.mubr.f32.gmra.mrb[0].mxu0 %v1440
        %v1650 = vpop.f32.mrb[0].mxu0
        %v1651 = vadd.f32 0.0, %v1650
        %v1652 = vpop.f32.mrb[0].mxu0
        %v1653 = vadd.f32 0.0, %v1652
        %1654 = vmatprep.mubr.f32.mxu0 0.0
        %1655 = vmatmul.mubr.f32.gmra.mrb[0].mxu0 %v1442
        %v1656 = vpop.f32.mrb[0].mxu0
        %v1657 = vadd.f32 0.0, %v1656
        %v1658 = vpop.f32.mrb[0].mxu0
        %v1659 = vadd.f32 0.0, %v1658
        %1660 = vmatprep.mubr.f32.mxu0 0.0
        %1661 = vmatmul.mubr.f32.gmra.mrb[0].mxu0 %v1444
        %v1662 = vpop.f32.mrb[0].mxu0
        %v1663 = vadd.f32 0.0, %v1662
        %v1664 = vpop.f32.mrb[0].mxu0
        %v1665 = vadd.f32 0.0, %v1664
        %1666 = vmatprep.mubr.f32.mxu0 0.0
        %1667 = vmatmul.mubr.f32.gmra.mrb[0].mxu0 %v1446
        %v1668 = vpop.f32.mrb[0].mxu0
        %v1669 = vadd.f32 0.0, %v1668
        %v1670 = vpop.f32.mrb[0].mxu0
        %v1671 = vadd.f32 0.0, %v1670
        %1672 = vdwg.mxu0
        %v1673 = vadd.f32 %v1288, %v1579
        %v1674 = vadd.f32 %v1289, %v1581
        %v1675 = vadd.f32 %v1290, %v1585
        %v1676 = vadd.f32 %v1291, %v1587
        %v1677 = vadd.f32 %v1292, %v1591
        %v1678 = vadd.f32 %v1293, %v1593
        %v1679 = vadd.f32 %v1294, %v1597
        %v1680 = vadd.f32 %v1295, %v1599
        %v1681 = vadd.f32 %v1296, %v1603
        %v1682 = vadd.f32 %v1297, %v1605
        %v1683 = vadd.f32 %v1298, %v1609
        %v1684 = vadd.f32 %v1299, %v1611
        %v1685 = vadd.f32 %v1300, %v1615
        %v1686 = vadd.f32 %v1301, %v1617
        %v1687 = vadd.f32 %v1302, %v1621
        %v1688 = vadd.f32 %v1303, %v1623
        %v1689 = vadd.f32 %v1304, %v1627
        %v1690 = vadd.f32 %v1305, %v1629
        %v1691 = vadd.f32 %v1306, %v1633
        %v1692 = vadd.f32 %v1307, %v1635
        %v1693 = vadd.f32 %v1308, %v1639
        %v1694 = vadd.f32 %v1309, %v1641
        %v1695 = vadd.f32 %v1310, %v1645
        %v1696 = vadd.f32 %v1311, %v1647
        %v1697 = vadd.f32 %v1312, %v1651
        %v1698 = vadd.f32 %v1313, %v1653
        %v1699 = vadd.f32 %v1314, %v1657
        %v1700 = vadd.f32 %v1315, %v1659
        %v1701 = vadd.f32 %v1316, %v1663
        %v1702 = vadd.f32 %v1317, %v1665
        %v1703 = vadd.f32 %v1318, %v1669
        %v1704 = vadd.f32 %v1319, %v1671
        %1705 = vrot.lane.b32.xlu0 %v228, 104
        %v1706 = vpop.permute.xlu0 %1705
        %1707 = vrot.lane.b32.xlu0 %v229, 104
        %v1708 = vpop.permute.xlu0 %1707
        %1709 = vrot.lane.b32.xlu0 %v230, 104
        %v1710 = vpop.permute.xlu0 %1709
        %1711 = vrot.lane.b32.xlu0 %v231, 104
        %v1712 = vpop.permute.xlu0 %1711
        %1713 = vrot.lane.b32.xlu0 %v232, 104
        %v1714 = vpop.permute.xlu0 %1713
        %1715 = vrot.lane.b32.xlu0 %v233, 104
        %v1716 = vpop.permute.xlu0 %1715
        %1717 = vrot.lane.b32.xlu0 %v234, 104
        %v1718 = vpop.permute.xlu0 %1717
        %1719 = vrot.lane.b32.xlu0 %v235, 104
        %v1720 = vpop.permute.xlu0 %1719
        %1721 = vrot.lane.b32.xlu0 %v236, 104
        %v1722 = vpop.permute.xlu0 %1721
        %1723 = vrot.lane.b32.xlu0 %v237, 104
        %v1724 = vpop.permute.xlu0 %1723
        %1725 = vrot.lane.b32.xlu0 %v238, 104
        %v1726 = vpop.permute.xlu0 %1725
        %1727 = vrot.lane.b32.xlu0 %v239, 104
        %v1728 = vpop.permute.xlu0 %1727
        %1729 = vrot.lane.b32.xlu0 %v240, 104
        %v1730 = vpop.permute.xlu0 %1729
        %1731 = vrot.lane.b32.xlu0 %v241, 104
        %v1732 = vpop.permute.xlu0 %1731
        %1733 = vrot.lane.b32.xlu0 %v242, 104
        %v1734 = vpop.permute.xlu0 %1733
        %1735 = vrot.lane.b32.xlu0 %v243, 104
        %v1736 = vpop.permute.xlu0 %1735
        %1737 = vrot.lane.b32.xlu0 %v244, 116
        %v1738 = vpop.permute.xlu0 %1737
        %1739 = vrot.lane.b32.xlu0 %v245, 116
        %v1740 = vpop.permute.xlu0 %1739
        %1741 = vrot.lane.b32.xlu0 %v246, 116
        %v1742 = vpop.permute.xlu0 %1741
        %1743 = vrot.lane.b32.xlu0 %v247, 116
        %v1744 = vpop.permute.xlu0 %1743
        %1745 = vrot.lane.b32.xlu0 %v248, 116
        %v1746 = vpop.permute.xlu0 %1745
        %1747 = vrot.lane.b32.xlu0 %v249, 116
        %v1748 = vpop.permute.xlu0 %1747
        %1749 = vrot.lane.b32.xlu0 %v250, 116
        %v1750 = vpop.permute.xlu0 %1749
        %1751 = vrot.lane.b32.xlu0 %v251, 116
        %v1752 = vpop.permute.xlu0 %1751
        %1753 = vrot.lane.b32.xlu0 %v252, 116
        %v1754 = vpop.permute.xlu0 %1753
        %1755 = vrot.lane.b32.xlu0 %v253, 116
        %v1756 = vpop.permute.xlu0 %1755
        %1757 = vrot.lane.b32.xlu0 %v254, 116
        %v1758 = vpop.permute.xlu0 %1757
        %1759 = vrot.lane.b32.xlu0 %v255, 116
        %v1760 = vpop.permute.xlu0 %1759
        %1761 = vrot.lane.b32.xlu0 %v256, 116
        %v1762 = vpop.permute.xlu0 %1761
        %1763 = vrot.lane.b32.xlu0 %v257, 116
        %v1764 = vpop.permute.xlu0 %1763
        %1765 = vrot.lane.b32.xlu0 %v258, 116
        %v1766 = vpop.permute.xlu0 %1765
        %1767 = vrot.lane.b32.xlu0 %v259, 116
        %v1768 = vpop.permute.xlu0 %1767
        %1769 = vrot.lane.b32.xlu0 %v260, 116
        %v1770 = vpop.permute.xlu0 %1769
        %1771 = vrot.lane.b32.xlu0 %v261, 116
        %v1772 = vpop.permute.xlu0 %1771
        %1773 = vrot.lane.b32.xlu0 %v262, 116
        %v1774 = vpop.permute.xlu0 %1773
        %1775 = vrot.lane.b32.xlu0 %v263, 116
        %v1776 = vpop.permute.xlu0 %1775
        %1777 = vrot.lane.b32.xlu0 %v264, 116
        %v1778 = vpop.permute.xlu0 %1777
        %1779 = vrot.lane.b32.xlu0 %v265, 116
        %v1780 = vpop.permute.xlu0 %1779
        %1781 = vrot.lane.b32.xlu0 %v266, 116
        %v1782 = vpop.permute.xlu0 %1781
        %1783 = vrot.lane.b32.xlu0 %v267, 116
        %v1784 = vpop.permute.xlu0 %1783
        %1785 = vrot.lane.b32.xlu0 %v268, 116
        %v1786 = vpop.permute.xlu0 %1785
        %1787 = vrot.lane.b32.xlu0 %v269, 116
        %v1788 = vpop.permute.xlu0 %1787
        %1789 = vrot.lane.b32.xlu0 %v270, 116
        %v1790 = vpop.permute.xlu0 %1789
        %1791 = vrot.lane.b32.xlu0 %v271, 116
        %v1792 = vpop.permute.xlu0 %1791
        %1793 = vrot.lane.b32.xlu0 %v272, 116
        %v1794 = vpop.permute.xlu0 %1793
        %1795 = vrot.lane.b32.xlu0 %v273, 116
        %v1796 = vpop.permute.xlu0 %1795
        %1797 = vrot.lane.b32.xlu0 %v274, 116
        %v1798 = vpop.permute.xlu0 %1797
        %1799 = vrot.lane.b32.xlu0 %v275, 116
        %v1800 = vpop.permute.xlu0 %1799
        %v1801 = vsel %vm420, %v1706, 0
        %v1803 = vsel %vm420, %v1708, 0
        %v1805 = vsel %vm420, %v1710, 0
        %v1807 = vsel %vm420, %v1712, 0
        %v1809 = vsel %vm420, %v1714, 0
        %v1811 = vsel %vm420, %v1716, 0
        %v1813 = vsel %vm420, %v1718, 0
        %v1815 = vsel %vm420, %v1720, 0
        %v1817 = vsel %vm420, %v1722, 0
        %v1819 = vsel %vm420, %v1724, 0
        %v1821 = vsel %vm420, %v1726, 0
        %v1823 = vsel %vm420, %v1728, 0
        %v1825 = vsel %vm420, %v1730, 0
        %v1827 = vsel %vm420, %v1732, 0
        %v1829 = vsel %vm420, %v1734, 0
        %v1831 = vsel %vm420, %v1736, 0
        %v1833 = vsel %vm420, %v1738, 0
        %v1835 = vsel %vm420, %v1740, 0
        %v1837 = vsel %vm420, %v1742, 0
        %v1839 = vsel %vm420, %v1744, 0
        %v1841 = vsel %vm420, %v1746, 0
        %v1843 = vsel %vm420, %v1748, 0
        %v1845 = vsel %vm420, %v1750, 0
        %v1847 = vsel %vm420, %v1752, 0
        %v1849 = vsel %vm420, %v1754, 0
        %v1851 = vsel %vm420, %v1756, 0
        %v1853 = vsel %vm420, %v1758, 0
        %v1855 = vsel %vm420, %v1760, 0
        %v1857 = vsel %vm420, %v1762, 0
        %v1859 = vsel %vm420, %v1764, 0
        %v1861 = vsel %vm420, %v1766, 0
        %v1863 = vsel %vm420, %v1768, 0
        %v1865 = vsel %vm420, %v1770, 0
        %v1867 = vsel %vm420, %v1772, 0
        %v1869 = vsel %vm420, %v1774, 0
        %v1871 = vsel %vm420, %v1776, 0
        %v1873 = vsel %vm420, %v1778, 0
        %v1875 = vsel %vm420, %v1780, 0
        %v1877 = vsel %vm420, %v1782, 0
        %v1879 = vsel %vm420, %v1784, 0
        %v1881 = vsel %vm420, %v1786, 0
        %v1883 = vsel %vm420, %v1788, 0
        %v1885 = vsel %vm420, %v1790, 0
        %v1887 = vsel %vm420, %v1792, 0
        %v1889 = vsel %vm420, %v1794, 0
        %v1891 = vsel %vm420, %v1796, 0
        %v1893 = vsel %vm420, %v1798, 0
        %v1895 = vsel %vm420, %v1800, 0
        %1897 = vmatprep.subr.mxu0 0.0
        %1898 = vmatpush1.xpose.msra.mxu0 %v1833
        %1899 = vmatprep.subr.mxu0 0.0
        %1900 = vmatpush1.xpose.msra.mxu0 %v1835
        %1901 = vmatprep.subr.mxu0 0.0
        %1902 = vmatpush1.xpose.msra.mxu0 %v1837
        %1903 = vmatprep.subr.mxu0 0.0
        %1904 = vmatpush1.xpose.msra.mxu0 %v1839
        %1905 = vmatprep.subr.mxu0 0.0
        %1906 = vmatpush1.xpose.msra.mxu0 %v1841
        %1907 = vmatprep.subr.mxu0 0.0
        %1908 = vmatpush1.xpose.msra.mxu0 %v1843
        %1909 = vmatprep.subr.mxu0 0.0
        %1910 = vmatpush1.xpose.msra.mxu0 %v1845
        %1911 = vmatprep.subr.mxu0 0.0
        %1912 = vmatpush1.xpose.msra.mxu0 %v1847
        %1913 = vmatprep.subr.mxu0 0.0
        %1914 = vmatpush1.xpose.msra.mxu0 %v1849
        %1915 = vmatprep.subr.mxu0 0.0
        %1916 = vmatpush1.xpose.msra.mxu0 %v1851
        %1917 = vmatprep.subr.mxu0 0.0
        %1918 = vmatpush1.xpose.msra.mxu0 %v1853
        %1919 = vmatprep.subr.mxu0 0.0
        %1920 = vmatpush1.xpose.msra.mxu0 %v1855
        %1921 = vmatprep.subr.mxu0 0.0
        %1922 = vmatpush1.xpose.msra.mxu0 %v1857
        %1923 = vmatprep.subr.mxu0 0.0
        %1924 = vmatpush1.xpose.msra.mxu0 %v1859
        %1925 = vmatprep.subr.mxu0 0.0
        %1926 = vmatpush1.xpose.msra.mxu0 %v1861
        %1927 = vmatprep.subr.mxu0 0.0
        %1928 = vmatpush1.xpose.msra.mxu0 %v1863
        %1929 = vmatprep.subr.mxu0 0.0
        %1930 = vmatpush1.xpose.msra.mxu0 %v1865
        %1931 = vmatprep.subr.mxu0 0.0
        %1932 = vmatpush1.xpose.msra.mxu0 %v1867
        %1933 = vmatprep.subr.mxu0 0.0
        %1934 = vmatpush1.xpose.msra.mxu0 %v1869
        %1935 = vmatprep.subr.mxu0 0.0
        %1936 = vmatpush1.xpose.msra.mxu0 %v1871
        %1937 = vmatprep.subr.mxu0 0.0
        %1938 = vmatpush1.xpose.msra.mxu0 %v1873
        %1939 = vmatprep.subr.mxu0 0.0
        %1940 = vmatpush1.xpose.msra.mxu0 %v1875
        %1941 = vmatprep.subr.mxu0 0.0
        %1942 = vmatpush1.xpose.msra.mxu0 %v1877
        %1943 = vmatprep.subr.mxu0 0.0
        %1944 = vmatpush1.xpose.msra.mxu0 %v1879
        %1945 = vmatprep.subr.mxu0 0.0
        %1946 = vmatpush1.xpose.msra.mxu0 %v1881
        %1947 = vmatprep.subr.mxu0 0.0
        %1948 = vmatpush1.xpose.msra.mxu0 %v1883
        %1949 = vmatprep.subr.mxu0 0.0
        %1950 = vmatpush1.xpose.msra.mxu0 %v1885
        %1951 = vmatprep.subr.mxu0 0.0
        %1952 = vmatpush1.xpose.msra.mxu0 %v1887
        %1953 = vmatprep.subr.mxu0 0.0
        %1954 = vmatpush1.xpose.msra.mxu0 %v1889
        %1955 = vmatprep.subr.mxu0 0.0
        %1956 = vmatpush1.xpose.msra.mxu0 %v1891
        %1957 = vmatprep.subr.mxu0 0.0
        %1958 = vmatpush1.xpose.msra.mxu0 %v1893
        %1959 = vmatprep.subr.mxu0 0.0
        %1960 = vmatpush1.xpose.msra.mxu0 %v1895
        %1961 = vmatprep.mubr.f32.mxu0 0.0
        %1962 = vmatmul.mubr.f32.gmra.mrb[0].mxu0 %v1801
        %v1963 = vpop.f32.mrb[0].mxu0
        %v1964 = vadd.f32 0.0, %v1963
        %v1965 = vpop.f32.mrb[0].mxu0
        %v1966 = vadd.f32 0.0, %v1965
        %1967 = vmatprep.mubr.f32.mxu0 0.0
        %1968 = vmatmul.mubr.f32.gmra.mrb[0].mxu0 %v1803
        %v1969 = vpop.f32.mrb[0].mxu0
        %v1970 = vadd.f32 0.0, %v1969
        %v1971 = vpop.f32.mrb[0].mxu0
        %v1972 = vadd.f32 0.0, %v1971
        %1973 = vmatprep.mubr.f32.mxu0 0.0
        %1974 = vmatmul.mubr.f32.gmra.mrb[0].mxu0 %v1805
        %v1975 = vpop.f32.mrb[0].mxu0
        %v1976 = vadd.f32 0.0, %v1975
        %v1977 = vpop.f32.mrb[0].mxu0
        %v1978 = vadd.f32 0.0, %v1977
        %1979 = vmatprep.mubr.f32.mxu0 0.0
        %1980 = vmatmul.mubr.f32.gmra.mrb[0].mxu0 %v1807
        %v1981 = vpop.f32.mrb[0].mxu0
        %v1982 = vadd.f32 0.0, %v1981
        %v1983 = vpop.f32.mrb[0].mxu0
        %v1984 = vadd.f32 0.0, %v1983
        %1985 = vmatprep.mubr.f32.mxu0 0.0
        %1986 = vmatmul.mubr.f32.gmra.mrb[0].mxu0 %v1809
        %v1987 = vpop.f32.mrb[0].mxu0
        %v1988 = vadd.f32 0.0, %v1987
        %v1989 = vpop.f32.mrb[0].mxu0
        %v1990 = vadd.f32 0.0, %v1989
        %1991 = vmatprep.mubr.f32.mxu0 0.0
        %1992 = vmatmul.mubr.f32.gmra.mrb[0].mxu0 %v1811
        %v1993 = vpop.f32.mrb[0].mxu0
        %v1994 = vadd.f32 0.0, %v1993
        %v1995 = vpop.f32.mrb[0].mxu0
        %v1996 = vadd.f32 0.0, %v1995
        %1997 = vmatprep.mubr.f32.mxu0 0.0
        %1998 = vmatmul.mubr.f32.gmra.mrb[0].mxu0 %v1813
        %v1999 = vpop.f32.mrb[0].mxu0
        %v2000 = vadd.f32 0.0, %v1999
        %v2001 = vpop.f32.mrb[0].mxu0
        %v2002 = vadd.f32 0.0, %v2001
        %2003 = vmatprep.mubr.f32.mxu0 0.0
        %2004 = vmatmul.mubr.f32.gmra.mrb[0].mxu0 %v1815
        %v2005 = vpop.f32.mrb[0].mxu0
        %v2006 = vadd.f32 0.0, %v2005
        %v2007 = vpop.f32.mrb[0].mxu0
        %v2008 = vadd.f32 0.0, %v2007
        %2009 = vmatprep.mubr.f32.mxu0 0.0
        %2010 = vmatmul.mubr.f32.gmra.mrb[0].mxu0 %v1817
        %v2011 = vpop.f32.mrb[0].mxu0
        %v2012 = vadd.f32 0.0, %v2011
        %v2013 = vpop.f32.mrb[0].mxu0
        %v2014 = vadd.f32 0.0, %v2013
        %2015 = vmatprep.mubr.f32.mxu0 0.0
        %2016 = vmatmul.mubr.f32.gmra.mrb[0].mxu0 %v1819
        %v2017 = vpop.f32.mrb[0].mxu0
        %v2018 = vadd.f32 0.0, %v2017
        %v2019 = vpop.f32.mrb[0].mxu0
        %v2020 = vadd.f32 0.0, %v2019
        %2021 = vmatprep.mubr.f32.mxu0 0.0
        %2022 = vmatmul.mubr.f32.gmra.mrb[0].mxu0 %v1821
        %v2023 = vpop.f32.mrb[0].mxu0
        %v2024 = vadd.f32 0.0, %v2023
        %v2025 = vpop.f32.mrb[0].mxu0
        %v2026 = vadd.f32 0.0, %v2025
        %2027 = vmatprep.mubr.f32.mxu0 0.0
        %2028 = vmatmul.mubr.f32.gmra.mrb[0].mxu0 %v1823
        %v2029 = vpop.f32.mrb[0].mxu0
        %v2030 = vadd.f32 0.0, %v2029
        %v2031 = vpop.f32.mrb[0].mxu0
        %v2032 = vadd.f32 0.0, %v2031
        %2033 = vmatprep.mubr.f32.mxu0 0.0
        %2034 = vmatmul.mubr.f32.gmra.mrb[0].mxu0 %v1825
        %v2035 = vpop.f32.mrb[0].mxu0
        %v2036 = vadd.f32 0.0, %v2035
        %v2037 = vpop.f32.mrb[0].mxu0
        %v2038 = vadd.f32 0.0, %v2037
        %2039 = vmatprep.mubr.f32.mxu0 0.0
        %2040 = vmatmul.mubr.f32.gmra.mrb[0].mxu0 %v1827
        %v2041 = vpop.f32.mrb[0].mxu0
        %v2042 = vadd.f32 0.0, %v2041
        %v2043 = vpop.f32.mrb[0].mxu0
        %v2044 = vadd.f32 0.0, %v2043
        %2045 = vmatprep.mubr.f32.mxu0 0.0
        %2046 = vmatmul.mubr.f32.gmra.mrb[0].mxu0 %v1829
        %v2047 = vpop.f32.mrb[0].mxu0
        %v2048 = vadd.f32 0.0, %v2047
        %v2049 = vpop.f32.mrb[0].mxu0
        %v2050 = vadd.f32 0.0, %v2049
        %2051 = vmatprep.mubr.f32.mxu0 0.0
        %2052 = vmatmul.mubr.f32.gmra.mrb[0].mxu0 %v1831
        %v2053 = vpop.f32.mrb[0].mxu0
        %v2054 = vadd.f32 0.0, %v2053
        %v2055 = vpop.f32.mrb[0].mxu0
        %v2056 = vadd.f32 0.0, %v2055
        %2057 = vdwg.mxu0
        %v2058 = vadd.f32 %v1673, %v1964
        %v2059 = vadd.f32 %v1674, %v1966
        %v2060 = vadd.f32 %v1675, %v1970
        %v2061 = vadd.f32 %v1676, %v1972
        %v2062 = vadd.f32 %v1677, %v1976
        %v2063 = vadd.f32 %v1678, %v1978
        %v2064 = vadd.f32 %v1679, %v1982
        %v2065 = vadd.f32 %v1680, %v1984
        %v2066 = vadd.f32 %v1681, %v1988
        %v2067 = vadd.f32 %v1682, %v1990
        %v2068 = vadd.f32 %v1683, %v1994
        %v2069 = vadd.f32 %v1684, %v1996
        %v2070 = vadd.f32 %v1685, %v2000
        %v2071 = vadd.f32 %v1686, %v2002
        %v2072 = vadd.f32 %v1687, %v2006
        %v2073 = vadd.f32 %v1688, %v2008
        %v2074 = vadd.f32 %v1689, %v2012
        %v2075 = vadd.f32 %v1690, %v2014
        %v2076 = vadd.f32 %v1691, %v2018
        %v2077 = vadd.f32 %v1692, %v2020
        %v2078 = vadd.f32 %v1693, %v2024
        %v2079 = vadd.f32 %v1694, %v2026
        %v2080 = vadd.f32 %v1695, %v2030
        %v2081 = vadd.f32 %v1696, %v2032
        %v2082 = vadd.f32 %v1697, %v2036
        %v2083 = vadd.f32 %v1698, %v2038
        %v2084 = vadd.f32 %v1699, %v2042
        %v2085 = vadd.f32 %v1700, %v2044
        %v2086 = vadd.f32 %v1701, %v2048
        %v2087 = vadd.f32 %v1702, %v2050
        %v2088 = vadd.f32 %v1703, %v2054
        %v2089 = vadd.f32 %v1704, %v2056
        %2090 = vrot.lane.b32.xlu0 %v228, 98
        %v2091 = vpop.permute.xlu0 %2090
        %2092 = vrot.lane.b32.xlu0 %v229, 98
        %v2093 = vpop.permute.xlu0 %2092
        %2094 = vrot.lane.b32.xlu0 %v230, 98
        %v2095 = vpop.permute.xlu0 %2094
        %2096 = vrot.lane.b32.xlu0 %v231, 98
        %v2097 = vpop.permute.xlu0 %2096
        %2098 = vrot.lane.b32.xlu0 %v232, 98
        %v2099 = vpop.permute.xlu0 %2098
        %2100 = vrot.lane.b32.xlu0 %v233, 98
        %v2101 = vpop.permute.xlu0 %2100
        %2102 = vrot.lane.b32.xlu0 %v234, 98
        %v2103 = vpop.permute.xlu0 %2102
        %2104 = vrot.lane.b32.xlu0 %v235, 98
        %v2105 = vpop.permute.xlu0 %2104
        %2106 = vrot.lane.b32.xlu0 %v236, 98
        %v2107 = vpop.permute.xlu0 %2106
        %2108 = vrot.lane.b32.xlu0 %v237, 98
        %v2109 = vpop.permute.xlu0 %2108
        %2110 = vrot.lane.b32.xlu0 %v238, 98
        %v2111 = vpop.permute.xlu0 %2110
        %2112 = vrot.lane.b32.xlu0 %v239, 98
        %v2113 = vpop.permute.xlu0 %2112
        %2114 = vrot.lane.b32.xlu0 %v240, 98
        %v2115 = vpop.permute.xlu0 %2114
        %2116 = vrot.lane.b32.xlu0 %v241, 98
        %v2117 = vpop.permute.xlu0 %2116
        %2118 = vrot.lane.b32.xlu0 %v242, 98
        %v2119 = vpop.permute.xlu0 %2118
        %2120 = vrot.lane.b32.xlu0 %v243, 98
        %v2121 = vpop.permute.xlu0 %2120
        %2122 = vrot.lane.b32.xlu0 %v244, 113
        %v2123 = vpop.permute.xlu0 %2122
        %2124 = vrot.lane.b32.xlu0 %v245, 113
        %v2125 = vpop.permute.xlu0 %2124
        %2126 = vrot.lane.b32.xlu0 %v246, 113
        %v2127 = vpop.permute.xlu0 %2126
        %2128 = vrot.lane.b32.xlu0 %v247, 113
        %v2129 = vpop.permute.xlu0 %2128
        %2130 = vrot.lane.b32.xlu0 %v248, 113
        %v2131 = vpop.permute.xlu0 %2130
        %2132 = vrot.lane.b32.xlu0 %v249, 113
        %v2133 = vpop.permute.xlu0 %2132
        %2134 = vrot.lane.b32.xlu0 %v250, 113
        %v2135 = vpop.permute.xlu0 %2134
        %2136 = vrot.lane.b32.xlu0 %v251, 113
        %v2137 = vpop.permute.xlu0 %2136
        %2138 = vrot.lane.b32.xlu0 %v252, 113
        %v2139 = vpop.permute.xlu0 %2138
        %2140 = vrot.lane.b32.xlu0 %v253, 113
        %v2141 = vpop.permute.xlu0 %2140
        %2142 = vrot.lane.b32.xlu0 %v254, 113
        %v2143 = vpop.permute.xlu0 %2142
        %2144 = vrot.lane.b32.xlu0 %v255, 113
        %v2145 = vpop.permute.xlu0 %2144
        %2146 = vrot.lane.b32.xlu0 %v256, 113
        %v2147 = vpop.permute.xlu0 %2146
        %2148 = vrot.lane.b32.xlu0 %v257, 113
        %v2149 = vpop.permute.xlu0 %2148
        %2150 = vrot.lane.b32.xlu0 %v258, 113
        %v2151 = vpop.permute.xlu0 %2150
        %2152 = vrot.lane.b32.xlu0 %v259, 113
        %v2153 = vpop.permute.xlu0 %2152
        %2154 = vrot.lane.b32.xlu0 %v260, 113
        %v2155 = vpop.permute.xlu0 %2154
        %2156 = vrot.lane.b32.xlu0 %v261, 113
        %v2157 = vpop.permute.xlu0 %2156
        %2158 = vrot.lane.b32.xlu0 %v262, 113
        %v2159 = vpop.permute.xlu0 %2158
        %2160 = vrot.lane.b32.xlu0 %v263, 113
        %v2161 = vpop.permute.xlu0 %2160
        %2162 = vrot.lane.b32.xlu0 %v264, 113
        %v2163 = vpop.permute.xlu0 %2162
        %2164 = vrot.lane.b32.xlu0 %v265, 113
        %v2165 = vpop.permute.xlu0 %2164
        %2166 = vrot.lane.b32.xlu0 %v266, 113
        %v2167 = vpop.permute.xlu0 %2166
        %2168 = vrot.lane.b32.xlu0 %v267, 113
        %v2169 = vpop.permute.xlu0 %2168
        %2170 = vrot.lane.b32.xlu0 %v268, 113
        %v2171 = vpop.permute.xlu0 %2170
        %2172 = vrot.lane.b32.xlu0 %v269, 113
        %v2173 = vpop.permute.xlu0 %2172
        %2174 = vrot.lane.b32.xlu0 %v270, 113
        %v2175 = vpop.permute.xlu0 %2174
        %2176 = vrot.lane.b32.xlu0 %v271, 113
        %v2177 = vpop.permute.xlu0 %2176
        %2178 = vrot.lane.b32.xlu0 %v272, 113
        %v2179 = vpop.permute.xlu0 %2178
        %2180 = vrot.lane.b32.xlu0 %v273, 113
        %v2181 = vpop.permute.xlu0 %2180
        %2182 = vrot.lane.b32.xlu0 %v274, 113
        %v2183 = vpop.permute.xlu0 %2182
        %2184 = vrot.lane.b32.xlu0 %v275, 113
        %v2185 = vpop.permute.xlu0 %2184
        %v2186 = vsel %vm420, %v2091, 0
        %v2188 = vsel %vm420, %v2093, 0
        %v2190 = vsel %vm420, %v2095, 0
        %v2192 = vsel %vm420, %v2097, 0
        %v2194 = vsel %vm420, %v2099, 0
        %v2196 = vsel %vm420, %v2101, 0
        %v2198 = vsel %vm420, %v2103, 0
        %v2200 = vsel %vm420, %v2105, 0
        %v2202 = vsel %vm420, %v2107, 0
        %v2204 = vsel %vm420, %v2109, 0
        %v2206 = vsel %vm420, %v2111, 0
        %v2208 = vsel %vm420, %v2113, 0
        %v2210 = vsel %vm420, %v2115, 0
        %v2212 = vsel %vm420, %v2117, 0
        %v2214 = vsel %vm420, %v2119, 0
        %v2216 = vsel %vm420, %v2121, 0
        %v2218 = vsel %vm420, %v2123, 0
        %v2220 = vsel %vm420, %v2125, 0
        %v2222 = vsel %vm420, %v2127, 0
        %v2224 = vsel %vm420, %v2129, 0
        %v2226 = vsel %vm420, %v2131, 0
        %v2228 = vsel %vm420, %v2133, 0
        %v2230 = vsel %vm420, %v2135, 0
        %v2232 = vsel %vm420, %v2137, 0
        %v2234 = vsel %vm420, %v2139, 0
        %v2236 = vsel %vm420, %v2141, 0
        %v2238 = vsel %vm420, %v2143, 0
        %v2240 = vsel %vm420, %v2145, 0
        %v2242 = vsel %vm420, %v2147, 0
        %v2244 = vsel %vm420, %v2149, 0
        %v2246 = vsel %vm420, %v2151, 0
        %v2248 = vsel %vm420, %v2153, 0
        %v2250 = vsel %vm420, %v2155, 0
        %v2252 = vsel %vm420, %v2157, 0
        %v2254 = vsel %vm420, %v2159, 0
        %v2256 = vsel %vm420, %v2161, 0
        %v2258 = vsel %vm420, %v2163, 0
        %v2260 = vsel %vm420, %v2165, 0
        %v2262 = vsel %vm420, %v2167, 0
        %v2264 = vsel %vm420, %v2169, 0
        %v2266 = vsel %vm420, %v2171, 0
        %v2268 = vsel %vm420, %v2173, 0
        %v2270 = vsel %vm420, %v2175, 0
        %v2272 = vsel %vm420, %v2177, 0
        %v2274 = vsel %vm420, %v2179, 0
        %v2276 = vsel %vm420, %v2181, 0
        %v2278 = vsel %vm420, %v2183, 0
        %v2280 = vsel %vm420, %v2185, 0
        %2282 = vmatprep.subr.mxu0 0.0
        %2283 = vmatpush1.xpose.msra.mxu0 %v2218
        %2284 = vmatprep.subr.mxu0 0.0
        %2285 = vmatpush1.xpose.msra.mxu0 %v2220
        %2286 = vmatprep.subr.mxu0 0.0
        %2287 = vmatpush1.xpose.msra.mxu0 %v2222
        %2288 = vmatprep.subr.mxu0 0.0
        %2289 = vmatpush1.xpose.msra.mxu0 %v2224
        %2290 = vmatprep.subr.mxu0 0.0
        %2291 = vmatpush1.xpose.msra.mxu0 %v2226
        %2292 = vmatprep.subr.mxu0 0.0
        %2293 = vmatpush1.xpose.msra.mxu0 %v2228
        %2294 = vmatprep.subr.mxu0 0.0
        %2295 = vmatpush1.xpose.msra.mxu0 %v2230
        %2296 = vmatprep.subr.mxu0 0.0
        %2297 = vmatpush1.xpose.msra.mxu0 %v2232
        %2298 = vmatprep.subr.mxu0 0.0
        %2299 = vmatpush1.xpose.msra.mxu0 %v2234
        %2300 = vmatprep.subr.mxu0 0.0
        %2301 = vmatpush1.xpose.msra.mxu0 %v2236
        %2302 = vmatprep.subr.mxu0 0.0
        %2303 = vmatpush1.xpose.msra.mxu0 %v2238
        %2304 = vmatprep.subr.mxu0 0.0
        %2305 = vmatpush1.xpose.msra.mxu0 %v2240
        %2306 = vmatprep.subr.mxu0 0.0
        %2307 = vmatpush1.xpose.msra.mxu0 %v2242
        %2308 = vmatprep.subr.mxu0 0.0
        %2309 = vmatpush1.xpose.msra.mxu0 %v2244
        %2310 = vmatprep.subr.mxu0 0.0
        %2311 = vmatpush1.xpose.msra.mxu0 %v2246
        %2312 = vmatprep.subr.mxu0 0.0
        %2313 = vmatpush1.xpose.msra.mxu0 %v2248
        %2314 = vmatprep.subr.mxu0 0.0
        %2315 = vmatpush1.xpose.msra.mxu0 %v2250
        %2316 = vmatprep.subr.mxu0 0.0
        %2317 = vmatpush1.xpose.msra.mxu0 %v2252
        %2318 = vmatprep.subr.mxu0 0.0
        %2319 = vmatpush1.xpose.msra.mxu0 %v2254
        %2320 = vmatprep.subr.mxu0 0.0
        %2321 = vmatpush1.xpose.msra.mxu0 %v2256
        %2322 = vmatprep.subr.mxu0 0.0
        %2323 = vmatpush1.xpose.msra.mxu0 %v2258
        %2324 = vmatprep.subr.mxu0 0.0
        %2325 = vmatpush1.xpose.msra.mxu0 %v2260
        %2326 = vmatprep.subr.mxu0 0.0
        %2327 = vmatpush1.xpose.msra.mxu0 %v2262
        %2328 = vmatprep.subr.mxu0 0.0
        %2329 = vmatpush1.xpose.msra.mxu0 %v2264
        %2330 = vmatprep.subr.mxu0 0.0
        %2331 = vmatpush1.xpose.msra.mxu0 %v2266
        %2332 = vmatprep.subr.mxu0 0.0
        %2333 = vmatpush1.xpose.msra.mxu0 %v2268
        %2334 = vmatprep.subr.mxu0 0.0
        %2335 = vmatpush1.xpose.msra.mxu0 %v2270
        %2336 = vmatprep.subr.mxu0 0.0
        %2337 = vmatpush1.xpose.msra.mxu0 %v2272
        %2338 = vmatprep.subr.mxu0 0.0
        %2339 = vmatpush1.xpose.msra.mxu0 %v2274
        %2340 = vmatprep.subr.mxu0 0.0
        %2341 = vmatpush1.xpose.msra.mxu0 %v2276
        %2342 = vmatprep.subr.mxu0 0.0
        %2343 = vmatpush1.xpose.msra.mxu0 %v2278
        %2344 = vmatprep.subr.mxu0 0.0
        %2345 = vmatpush1.xpose.msra.mxu0 %v2280
        %2346 = vmatprep.mubr.f32.mxu0 0.0
        %2347 = vmatmul.mubr.f32.gmra.mrb[0].mxu0 %v2186
        %v2348 = vpop.f32.mrb[0].mxu0
        %v2349 = vadd.f32 0.0, %v2348
        %v2350 = vpop.f32.mrb[0].mxu0
        %v2351 = vadd.f32 0.0, %v2350
        %2352 = vmatprep.mubr.f32.mxu0 0.0
        %2353 = vmatmul.mubr.f32.gmra.mrb[0].mxu0 %v2188
        %v2354 = vpop.f32.mrb[0].mxu0
        %v2355 = vadd.f32 0.0, %v2354
        %v2356 = vpop.f32.mrb[0].mxu0
        %v2357 = vadd.f32 0.0, %v2356
        %2358 = vmatprep.mubr.f32.mxu0 0.0
        %2359 = vmatmul.mubr.f32.gmra.mrb[0].mxu0 %v2190
        %v2360 = vpop.f32.mrb[0].mxu0
        %v2361 = vadd.f32 0.0, %v2360
        %v2362 = vpop.f32.mrb[0].mxu0
        %v2363 = vadd.f32 0.0, %v2362
        %2364 = vmatprep.mubr.f32.mxu0 0.0
        %2365 = vmatmul.mubr.f32.gmra.mrb[0].mxu0 %v2192
        %v2366 = vpop.f32.mrb[0].mxu0
        %v2367 = vadd.f32 0.0, %v2366
        %v2368 = vpop.f32.mrb[0].mxu0
        %v2369 = vadd.f32 0.0, %v2368
        %2370 = vmatprep.mubr.f32.mxu0 0.0
        %2371 = vmatmul.mubr.f32.gmra.mrb[0].mxu0 %v2194
        %v2372 = vpop.f32.mrb[0].mxu0
        %v2373 = vadd.f32 0.0, %v2372
        %v2374 = vpop.f32.mrb[0].mxu0
        %v2375 = vadd.f32 0.0, %v2374
        %2376 = vmatprep.mubr.f32.mxu0 0.0
        %2377 = vmatmul.mubr.f32.gmra.mrb[0].mxu0 %v2196
        %v2378 = vpop.f32.mrb[0].mxu0
        %v2379 = vadd.f32 0.0, %v2378
        %v2380 = vpop.f32.mrb[0].mxu0
        %v2381 = vadd.f32 0.0, %v2380
        %2382 = vmatprep.mubr.f32.mxu0 0.0
        %2383 = vmatmul.mubr.f32.gmra.mrb[0].mxu0 %v2198
        %v2384 = vpop.f32.mrb[0].mxu0
        %v2385 = vadd.f32 0.0, %v2384
        %v2386 = vpop.f32.mrb[0].mxu0
        %v2387 = vadd.f32 0.0, %v2386
        %2388 = vmatprep.mubr.f32.mxu0 0.0
        %2389 = vmatmul.mubr.f32.gmra.mrb[0].mxu0 %v2200
        %v2390 = vpop.f32.mrb[0].mxu0
        %v2391 = vadd.f32 0.0, %v2390
        %v2392 = vpop.f32.mrb[0].mxu0
        %v2393 = vadd.f32 0.0, %v2392
        %2394 = vmatprep.mubr.f32.mxu0 0.0
        %2395 = vmatmul.mubr.f32.gmra.mrb[0].mxu0 %v2202
        %v2396 = vpop.f32.mrb[0].mxu0
        %v2397 = vadd.f32 0.0, %v2396
        %v2398 = vpop.f32.mrb[0].mxu0
        %v2399 = vadd.f32 0.0, %v2398
        %2400 = vmatprep.mubr.f32.mxu0 0.0
        %2401 = vmatmul.mubr.f32.gmra.mrb[0].mxu0 %v2204
        %v2402 = vpop.f32.mrb[0].mxu0
        %v2403 = vadd.f32 0.0, %v2402
        %v2404 = vpop.f32.mrb[0].mxu0
        %v2405 = vadd.f32 0.0, %v2404
        %2406 = vmatprep.mubr.f32.mxu0 0.0
        %2407 = vmatmul.mubr.f32.gmra.mrb[0].mxu0 %v2206
        %v2408 = vpop.f32.mrb[0].mxu0
        %v2409 = vadd.f32 0.0, %v2408
        %v2410 = vpop.f32.mrb[0].mxu0
        %v2411 = vadd.f32 0.0, %v2410
        %2412 = vmatprep.mubr.f32.mxu0 0.0
        %2413 = vmatmul.mubr.f32.gmra.mrb[0].mxu0 %v2208
        %v2414 = vpop.f32.mrb[0].mxu0
        %v2415 = vadd.f32 0.0, %v2414
        %v2416 = vpop.f32.mrb[0].mxu0
        %v2417 = vadd.f32 0.0, %v2416
        %2418 = vmatprep.mubr.f32.mxu0 0.0
        %2419 = vmatmul.mubr.f32.gmra.mrb[0].mxu0 %v2210
        %v2420 = vpop.f32.mrb[0].mxu0
        %v2421 = vadd.f32 0.0, %v2420
        %v2422 = vpop.f32.mrb[0].mxu0
        %v2423 = vadd.f32 0.0, %v2422
        %2424 = vmatprep.mubr.f32.mxu0 0.0
        %2425 = vmatmul.mubr.f32.gmra.mrb[0].mxu0 %v2212
        %v2426 = vpop.f32.mrb[0].mxu0
        %v2427 = vadd.f32 0.0, %v2426
        %v2428 = vpop.f32.mrb[0].mxu0
        %v2429 = vadd.f32 0.0, %v2428
        %2430 = vmatprep.mubr.f32.mxu0 0.0
        %2431 = vmatmul.mubr.f32.gmra.mrb[0].mxu0 %v2214
        %v2432 = vpop.f32.mrb[0].mxu0
        %v2433 = vadd.f32 0.0, %v2432
        %v2434 = vpop.f32.mrb[0].mxu0
        %v2435 = vadd.f32 0.0, %v2434
        %2436 = vmatprep.mubr.f32.mxu0 0.0
        %2437 = vmatmul.mubr.f32.gmra.mrb[0].mxu0 %v2216
        %v2438 = vpop.f32.mrb[0].mxu0
        %v2439 = vadd.f32 0.0, %v2438
        %v2440 = vpop.f32.mrb[0].mxu0
        %v2441 = vadd.f32 0.0, %v2440
        %2442 = vdwg.mxu0
        %v2443 = vadd.f32 %v2058, %v2349
        %v2444 = vadd.f32 %v2059, %v2351
        %v2445 = vadd.f32 %v2060, %v2355
        %v2446 = vadd.f32 %v2061, %v2357
        %v2447 = vadd.f32 %v2062, %v2361
        %v2448 = vadd.f32 %v2063, %v2363
        %v2449 = vadd.f32 %v2064, %v2367
        %v2450 = vadd.f32 %v2065, %v2369
        %v2451 = vadd.f32 %v2066, %v2373
        %v2452 = vadd.f32 %v2067, %v2375
        %v2453 = vadd.f32 %v2068, %v2379
        %v2454 = vadd.f32 %v2069, %v2381
        %v2455 = vadd.f32 %v2070, %v2385
        %v2456 = vadd.f32 %v2071, %v2387
        %v2457 = vadd.f32 %v2072, %v2391
        %v2458 = vadd.f32 %v2073, %v2393
        %v2459 = vadd.f32 %v2074, %v2397
        %v2460 = vadd.f32 %v2075, %v2399
        %v2461 = vadd.f32 %v2076, %v2403
        %v2462 = vadd.f32 %v2077, %v2405
        %v2463 = vadd.f32 %v2078, %v2409
        %v2464 = vadd.f32 %v2079, %v2411
        %v2465 = vadd.f32 %v2080, %v2415
        %v2466 = vadd.f32 %v2081, %v2417
        %v2467 = vadd.f32 %v2082, %v2421
        %v2468 = vadd.f32 %v2083, %v2423
        %v2469 = vadd.f32 %v2084, %v2427
        %v2470 = vadd.f32 %v2085, %v2429
        %v2471 = vadd.f32 %v2086, %v2433
        %v2472 = vadd.f32 %v2087, %v2435
        %v2473 = vadd.f32 %v2088, %v2439
        %v2474 = vadd.f32 %v2089, %v2441
        %2475 = vrot.lane.b32.xlu0 %v228, 92
        %v2476 = vpop.permute.xlu0 %2475
        %2477 = vrot.lane.b32.xlu0 %v229, 92
        %v2478 = vpop.permute.xlu0 %2477
        %2479 = vrot.lane.b32.xlu0 %v230, 92
        %v2480 = vpop.permute.xlu0 %2479
        %2481 = vrot.lane.b32.xlu0 %v231, 92
        %v2482 = vpop.permute.xlu0 %2481
        %2483 = vrot.lane.b32.xlu0 %v232, 92
        %v2484 = vpop.permute.xlu0 %2483
        %2485 = vrot.lane.b32.xlu0 %v233, 92
        %v2486 = vpop.permute.xlu0 %2485
        %2487 = vrot.lane.b32.xlu0 %v234, 92
        %v2488 = vpop.permute.xlu0 %2487
        %2489 = vrot.lane.b32.xlu0 %v235, 92
        %v2490 = vpop.permute.xlu0 %2489
        %2491 = vrot.lane.b32.xlu0 %v236, 92
        %v2492 = vpop.permute.xlu0 %2491
        %2493 = vrot.lane.b32.xlu0 %v237, 92
        %v2494 = vpop.permute.xlu0 %2493
        %2495 = vrot.lane.b32.xlu0 %v238, 92
        %v2496 = vpop.permute.xlu0 %2495
        %2497 = vrot.lane.b32.xlu0 %v239, 92
        %v2498 = vpop.permute.xlu0 %2497
        %2499 = vrot.lane.b32.xlu0 %v240, 92
        %v2500 = vpop.permute.xlu0 %2499
        %2501 = vrot.lane.b32.xlu0 %v241, 92
        %v2502 = vpop.permute.xlu0 %2501
        %2503 = vrot.lane.b32.xlu0 %v242, 92
        %v2504 = vpop.permute.xlu0 %2503
        %2505 = vrot.lane.b32.xlu0 %v243, 92
        %v2506 = vpop.permute.xlu0 %2505
        %2507 = vrot.lane.b32.xlu0 %v244, 110
        %v2508 = vpop.permute.xlu0 %2507
        %2509 = vrot.lane.b32.xlu0 %v245, 110
        %v2510 = vpop.permute.xlu0 %2509
        %2511 = vrot.lane.b32.xlu0 %v246, 110
        %v2512 = vpop.permute.xlu0 %2511
        %2513 = vrot.lane.b32.xlu0 %v247, 110
        %v2514 = vpop.permute.xlu0 %2513
        %2515 = vrot.lane.b32.xlu0 %v248, 110
        %v2516 = vpop.permute.xlu0 %2515
        %2517 = vrot.lane.b32.xlu0 %v249, 110
        %v2518 = vpop.permute.xlu0 %2517
        %2519 = vrot.lane.b32.xlu0 %v250, 110
        %v2520 = vpop.permute.xlu0 %2519
        %2521 = vrot.lane.b32.xlu0 %v251, 110
        %v2522 = vpop.permute.xlu0 %2521
        %2523 = vrot.lane.b32.xlu0 %v252, 110
        %v2524 = vpop.permute.xlu0 %2523
        %2525 = vrot.lane.b32.xlu0 %v253, 110
        %v2526 = vpop.permute.xlu0 %2525
        %2527 = vrot.lane.b32.xlu0 %v254, 110
        %v2528 = vpop.permute.xlu0 %2527
        %2529 = vrot.lane.b32.xlu0 %v255, 110
        %v2530 = vpop.permute.xlu0 %2529
        %2531 = vrot.lane.b32.xlu0 %v256, 110
        %v2532 = vpop.permute.xlu0 %2531
        %2533 = vrot.lane.b32.xlu0 %v257, 110
        %v2534 = vpop.permute.xlu0 %2533
        %2535 = vrot.lane.b32.xlu0 %v258, 110
        %v2536 = vpop.permute.xlu0 %2535
        %2537 = vrot.lane.b32.xlu0 %v259, 110
        %v2538 = vpop.permute.xlu0 %2537
        %2539 = vrot.lane.b32.xlu0 %v260, 110
        %v2540 = vpop.permute.xlu0 %2539
        %2541 = vrot.lane.b32.xlu0 %v261, 110
        %v2542 = vpop.permute.xlu0 %2541
        %2543 = vrot.lane.b32.xlu0 %v262, 110
        %v2544 = vpop.permute.xlu0 %2543
        %2545 = vrot.lane.b32.xlu0 %v263, 110
        %v2546 = vpop.permute.xlu0 %2545
        %2547 = vrot.lane.b32.xlu0 %v264, 110
        %v2548 = vpop.permute.xlu0 %2547
        %2549 = vrot.lane.b32.xlu0 %v265, 110
        %v2550 = vpop.permute.xlu0 %2549
        %2551 = vrot.lane.b32.xlu0 %v266, 110
        %v2552 = vpop.permute.xlu0 %2551
        %2553 = vrot.lane.b32.xlu0 %v267, 110
        %v2554 = vpop.permute.xlu0 %2553
        %2555 = vrot.lane.b32.xlu0 %v268, 110
        %v2556 = vpop.permute.xlu0 %2555
        %2557 = vrot.lane.b32.xlu0 %v269, 110
        %v2558 = vpop.permute.xlu0 %2557
        %2559 = vrot.lane.b32.xlu0 %v270, 110
        %v2560 = vpop.permute.xlu0 %2559
        %2561 = vrot.lane.b32.xlu0 %v271, 110
        %v2562 = vpop.permute.xlu0 %2561
        %2563 = vrot.lane.b32.xlu0 %v272, 110
        %v2564 = vpop.permute.xlu0 %2563
        %2565 = vrot.lane.b32.xlu0 %v273, 110
        %v2566 = vpop.permute.xlu0 %2565
        %2567 = vrot.lane.b32.xlu0 %v274, 110
        %v2568 = vpop.permute.xlu0 %2567
        %2569 = vrot.lane.b32.xlu0 %v275, 110
        %v2570 = vpop.permute.xlu0 %2569
        %v2571 = vsel %vm420, %v2476, 0
        %v2573 = vsel %vm420, %v2478, 0
        %v2575 = vsel %vm420, %v2480, 0
        %v2577 = vsel %vm420, %v2482, 0
        %v2579 = vsel %vm420, %v2484, 0
        %v2581 = vsel %vm420, %v2486, 0
        %v2583 = vsel %vm420, %v2488, 0
        %v2585 = vsel %vm420, %v2490, 0
        %v2587 = vsel %vm420, %v2492, 0
        %v2589 = vsel %vm420, %v2494, 0
        %v2591 = vsel %vm420, %v2496, 0
        %v2593 = vsel %vm420, %v2498, 0
        %v2595 = vsel %vm420, %v2500, 0
        %v2597 = vsel %vm420, %v2502, 0
        %v2599 = vsel %vm420, %v2504, 0
        %v2601 = vsel %vm420, %v2506, 0
        %v2603 = vsel %vm420, %v2508, 0
        %v2605 = vsel %vm420, %v2510, 0
        %v2607 = vsel %vm420, %v2512, 0
        %v2609 = vsel %vm420, %v2514, 0
        %v2611 = vsel %vm420, %v2516, 0
        %v2613 = vsel %vm420, %v2518, 0
        %v2615 = vsel %vm420, %v2520, 0
        %v2617 = vsel %vm420, %v2522, 0
        %v2619 = vsel %vm420, %v2524, 0
        %v2621 = vsel %vm420, %v2526, 0
        %v2623 = vsel %vm420, %v2528, 0
        %v2625 = vsel %vm420, %v2530, 0
        %v2627 = vsel %vm420, %v2532, 0
        %v2629 = vsel %vm420, %v2534, 0
        %v2631 = vsel %vm420, %v2536, 0
        %v2633 = vsel %vm420, %v2538, 0
        %v2635 = vsel %vm420, %v2540, 0
        %v2637 = vsel %vm420, %v2542, 0
        %v2639 = vsel %vm420, %v2544, 0
        %v2641 = vsel %vm420, %v2546, 0
        %v2643 = vsel %vm420, %v2548, 0
        %v2645 = vsel %vm420, %v2550, 0
        %v2647 = vsel %vm420, %v2552, 0
        %v2649 = vsel %vm420, %v2554, 0
        %v2651 = vsel %vm420, %v2556, 0
        %v2653 = vsel %vm420, %v2558, 0
        %v2655 = vsel %vm420, %v2560, 0
        %v2657 = vsel %vm420, %v2562, 0
        %v2659 = vsel %vm420, %v2564, 0
        %v2661 = vsel %vm420, %v2566, 0
        %v2663 = vsel %vm420, %v2568, 0
        %v2665 = vsel %vm420, %v2570, 0
        %2667 = vmatprep.subr.mxu0 0.0
        %2668 = vmatpush1.xpose.msra.mxu0 %v2603
        %2669 = vmatprep.subr.mxu0 0.0
        %2670 = vmatpush1.xpose.msra.mxu0 %v2605
        %2671 = vmatprep.subr.mxu0 0.0
        %2672 = vmatpush1.xpose.msra.mxu0 %v2607
        %2673 = vmatprep.subr.mxu0 0.0
        %2674 = vmatpush1.xpose.msra.mxu0 %v2609
        %2675 = vmatprep.subr.mxu0 0.0
        %2676 = vmatpush1.xpose.msra.mxu0 %v2611
        %2677 = vmatprep.subr.mxu0 0.0
        %2678 = vmatpush1.xpose.msra.mxu0 %v2613
        %2679 = vmatprep.subr.mxu0 0.0
        %2680 = vmatpush1.xpose.msra.mxu0 %v2615
        %2681 = vmatprep.subr.mxu0 0.0
        %2682 = vmatpush1.xpose.msra.mxu0 %v2617
        %2683 = vmatprep.subr.mxu0 0.0
        %2684 = vmatpush1.xpose.msra.mxu0 %v2619
        %2685 = vmatprep.subr.mxu0 0.0
        %2686 = vmatpush1.xpose.msra.mxu0 %v2621
        %2687 = vmatprep.subr.mxu0 0.0
        %2688 = vmatpush1.xpose.msra.mxu0 %v2623
        %2689 = vmatprep.subr.mxu0 0.0
        %2690 = vmatpush1.xpose.msra.mxu0 %v2625
        %2691 = vmatprep.subr.mxu0 0.0
        %2692 = vmatpush1.xpose.msra.mxu0 %v2627
        %2693 = vmatprep.subr.mxu0 0.0
        %2694 = vmatpush1.xpose.msra.mxu0 %v2629
        %2695 = vmatprep.subr.mxu0 0.0
        %2696 = vmatpush1.xpose.msra.mxu0 %v2631
        %2697 = vmatprep.subr.mxu0 0.0
        %2698 = vmatpush1.xpose.msra.mxu0 %v2633
        %2699 = vmatprep.subr.mxu0 0.0
        %2700 = vmatpush1.xpose.msra.mxu0 %v2635
        %2701 = vmatprep.subr.mxu0 0.0
        %2702 = vmatpush1.xpose.msra.mxu0 %v2637
        %2703 = vmatprep.subr.mxu0 0.0
        %2704 = vmatpush1.xpose.msra.mxu0 %v2639
        %2705 = vmatprep.subr.mxu0 0.0
        %2706 = vmatpush1.xpose.msra.mxu0 %v2641
        %2707 = vmatprep.subr.mxu0 0.0
        %2708 = vmatpush1.xpose.msra.mxu0 %v2643
        %2709 = vmatprep.subr.mxu0 0.0
        %2710 = vmatpush1.xpose.msra.mxu0 %v2645
        %2711 = vmatprep.subr.mxu0 0.0
        %2712 = vmatpush1.xpose.msra.mxu0 %v2647
        %2713 = vmatprep.subr.mxu0 0.0
        %2714 = vmatpush1.xpose.msra.mxu0 %v2649
        %2715 = vmatprep.subr.mxu0 0.0
        %2716 = vmatpush1.xpose.msra.mxu0 %v2651
        %2717 = vmatprep.subr.mxu0 0.0
        %2718 = vmatpush1.xpose.msra.mxu0 %v2653
        %2719 = vmatprep.subr.mxu0 0.0
        %2720 = vmatpush1.xpose.msra.mxu0 %v2655
        %2721 = vmatprep.subr.mxu0 0.0
        %2722 = vmatpush1.xpose.msra.mxu0 %v2657
        %2723 = vmatprep.subr.mxu0 0.0
        %2724 = vmatpush1.xpose.msra.mxu0 %v2659
        %2725 = vmatprep.subr.mxu0 0.0
        %2726 = vmatpush1.xpose.msra.mxu0 %v2661
        %2727 = vmatprep.subr.mxu0 0.0
        %2728 = vmatpush1.xpose.msra.mxu0 %v2663
        %2729 = vmatprep.subr.mxu0 0.0
        %2730 = vmatpush1.xpose.msra.mxu0 %v2665
        %2731 = vmatprep.mubr.f32.mxu0 0.0
        %2732 = vmatmul.mubr.f32.gmra.mrb[0].mxu0 %v2571
        %v2733 = vpop.f32.mrb[0].mxu0
        %v2734 = vadd.f32 0.0, %v2733
        %v2735 = vpop.f32.mrb[0].mxu0
        %v2736 = vadd.f32 0.0, %v2735
        %2737 = vmatprep.mubr.f32.mxu0 0.0
        %2738 = vmatmul.mubr.f32.gmra.mrb[0].mxu0 %v2573
        %v2739 = vpop.f32.mrb[0].mxu0
        %v2740 = vadd.f32 0.0, %v2739
        %v2741 = vpop.f32.mrb[0].mxu0
        %v2742 = vadd.f32 0.0, %v2741
        %2743 = vmatprep.mubr.f32.mxu0 0.0
        %2744 = vmatmul.mubr.f32.gmra.mrb[0].mxu0 %v2575
        %v2745 = vpop.f32.mrb[0].mxu0
        %v2746 = vadd.f32 0.0, %v2745
        %v2747 = vpop.f32.mrb[0].mxu0
        %v2748 = vadd.f32 0.0, %v2747
        %2749 = vmatprep.mubr.f32.mxu0 0.0
        %2750 = vmatmul.mubr.f32.gmra.mrb[0].mxu0 %v2577
        %v2751 = vpop.f32.mrb[0].mxu0
        %v2752 = vadd.f32 0.0, %v2751
        %v2753 = vpop.f32.mrb[0].mxu0
        %v2754 = vadd.f32 0.0, %v2753
        %2755 = vmatprep.mubr.f32.mxu0 0.0
        %2756 = vmatmul.mubr.f32.gmra.mrb[0].mxu0 %v2579
        %v2757 = vpop.f32.mrb[0].mxu0
        %v2758 = vadd.f32 0.0, %v2757
        %v2759 = vpop.f32.mrb[0].mxu0
        %v2760 = vadd.f32 0.0, %v2759
        %2761 = vmatprep.mubr.f32.mxu0 0.0
        %2762 = vmatmul.mubr.f32.gmra.mrb[0].mxu0 %v2581
        %v2763 = vpop.f32.mrb[0].mxu0
        %v2764 = vadd.f32 0.0, %v2763
        %v2765 = vpop.f32.mrb[0].mxu0
        %v2766 = vadd.f32 0.0, %v2765
        %2767 = vmatprep.mubr.f32.mxu0 0.0
        %2768 = vmatmul.mubr.f32.gmra.mrb[0].mxu0 %v2583
        %v2769 = vpop.f32.mrb[0].mxu0
        %v2770 = vadd.f32 0.0, %v2769
        %v2771 = vpop.f32.mrb[0].mxu0
        %v2772 = vadd.f32 0.0, %v2771
        %2773 = vmatprep.mubr.f32.mxu0 0.0
        %2774 = vmatmul.mubr.f32.gmra.mrb[0].mxu0 %v2585
        %v2775 = vpop.f32.mrb[0].mxu0
        %v2776 = vadd.f32 0.0, %v2775
        %v2777 = vpop.f32.mrb[0].mxu0
        %v2778 = vadd.f32 0.0, %v2777
        %2779 = vmatprep.mubr.f32.mxu0 0.0
        %2780 = vmatmul.mubr.f32.gmra.mrb[0].mxu0 %v2587
        %v2781 = vpop.f32.mrb[0].mxu0
        %v2782 = vadd.f32 0.0, %v2781
        %v2783 = vpop.f32.mrb[0].mxu0
        %v2784 = vadd.f32 0.0, %v2783
        %2785 = vmatprep.mubr.f32.mxu0 0.0
        %2786 = vmatmul.mubr.f32.gmra.mrb[0].mxu0 %v2589
        %v2787 = vpop.f32.mrb[0].mxu0
        %v2788 = vadd.f32 0.0, %v2787
        %v2789 = vpop.f32.mrb[0].mxu0
        %v2790 = vadd.f32 0.0, %v2789
        %2791 = vmatprep.mubr.f32.mxu0 0.0
        %2792 = vmatmul.mubr.f32.gmra.mrb[0].mxu0 %v2591
        %v2793 = vpop.f32.mrb[0].mxu0
        %v2794 = vadd.f32 0.0, %v2793
        %v2795 = vpop.f32.mrb[0].mxu0
        %v2796 = vadd.f32 0.0, %v2795
        %2797 = vmatprep.mubr.f32.mxu0 0.0
        %2798 = vmatmul.mubr.f32.gmra.mrb[0].mxu0 %v2593
        %v2799 = vpop.f32.mrb[0].mxu0
        %v2800 = vadd.f32 0.0, %v2799
        %v2801 = vpop.f32.mrb[0].mxu0
        %v2802 = vadd.f32 0.0, %v2801
        %2803 = vmatprep.mubr.f32.mxu0 0.0
        %2804 = vmatmul.mubr.f32.gmra.mrb[0].mxu0 %v2595
        %v2805 = vpop.f32.mrb[0].mxu0
        %v2806 = vadd.f32 0.0, %v2805
        %v2807 = vpop.f32.mrb[0].mxu0
        %v2808 = vadd.f32 0.0, %v2807
        %2809 = vmatprep.mubr.f32.mxu0 0.0
        %2810 = vmatmul.mubr.f32.gmra.mrb[0].mxu0 %v2597
        %v2811 = vpop.f32.mrb[0].mxu0
        %v2812 = vadd.f32 0.0, %v2811
        %v2813 = vpop.f32.mrb[0].mxu0
        %v2814 = vadd.f32 0.0, %v2813
        %2815 = vmatprep.mubr.f32.mxu0 0.0
        %2816 = vmatmul.mubr.f32.gmra.mrb[0].mxu0 %v2599
        %v2817 = vpop.f32.mrb[0].mxu0
        %v2818 = vadd.f32 0.0, %v2817
        %v2819 = vpop.f32.mrb[0].mxu0
        %v2820 = vadd.f32 0.0, %v2819
        %2821 = vmatprep.mubr.f32.mxu0 0.0
        %2822 = vmatmul.mubr.f32.gmra.mrb[0].mxu0 %v2601
        %v2823 = vpop.f32.mrb[0].mxu0
        %v2824 = vadd.f32 0.0, %v2823
        %v2825 = vpop.f32.mrb[0].mxu0
        %v2826 = vadd.f32 0.0, %v2825
        %2827 = vdwg.mxu0
        %v2828 = vadd.f32 %v2443, %v2734
        %v2829 = vadd.f32 %v2444, %v2736
        %v2830 = vadd.f32 %v2445, %v2740
        %v2831 = vadd.f32 %v2446, %v2742
        %v2832 = vadd.f32 %v2447, %v2746
        %v2833 = vadd.f32 %v2448, %v2748
        %v2834 = vadd.f32 %v2449, %v2752
        %v2835 = vadd.f32 %v2450, %v2754
        %v2836 = vadd.f32 %v2451, %v2758
        %v2837 = vadd.f32 %v2452, %v2760
        %v2838 = vadd.f32 %v2453, %v2764
        %v2839 = vadd.f32 %v2454, %v2766
        %v2840 = vadd.f32 %v2455, %v2770
        %v2841 = vadd.f32 %v2456, %v2772
        %v2842 = vadd.f32 %v2457, %v2776
        %v2843 = vadd.f32 %v2458, %v2778
        %v2844 = vadd.f32 %v2459, %v2782
        %v2845 = vadd.f32 %v2460, %v2784
        %v2846 = vadd.f32 %v2461, %v2788
        %v2847 = vadd.f32 %v2462, %v2790
        %v2848 = vadd.f32 %v2463, %v2794
        %v2849 = vadd.f32 %v2464, %v2796
        %v2850 = vadd.f32 %v2465, %v2800
        %v2851 = vadd.f32 %v2466, %v2802
        %v2852 = vadd.f32 %v2467, %v2806
        %v2853 = vadd.f32 %v2468, %v2808
        %v2854 = vadd.f32 %v2469, %v2812
        %v2855 = vadd.f32 %v2470, %v2814
        %v2856 = vadd.f32 %v2471, %v2818
        %v2857 = vadd.f32 %v2472, %v2820
        %v2858 = vadd.f32 %v2473, %v2824
        %v2859 = vadd.f32 %v2474, %v2826
        %2860 = vrot.lane.b32.xlu0 %v228, 86
        %v2861 = vpop.permute.xlu0 %2860
        %2862 = vrot.lane.b32.xlu0 %v229, 86
        %v2863 = vpop.permute.xlu0 %2862
        %2864 = vrot.lane.b32.xlu0 %v230, 86
        %v2865 = vpop.permute.xlu0 %2864
        %2866 = vrot.lane.b32.xlu0 %v231, 86
        %v2867 = vpop.permute.xlu0 %2866
        %2868 = vrot.lane.b32.xlu0 %v232, 86
        %v2869 = vpop.permute.xlu0 %2868
        %2870 = vrot.lane.b32.xlu0 %v233, 86
        %v2871 = vpop.permute.xlu0 %2870
        %2872 = vrot.lane.b32.xlu0 %v234, 86
        %v2873 = vpop.permute.xlu0 %2872
        %2874 = vrot.lane.b32.xlu0 %v235, 86
        %v2875 = vpop.permute.xlu0 %2874
        %2876 = vrot.lane.b32.xlu0 %v236, 86
        %v2877 = vpop.permute.xlu0 %2876
        %2878 = vrot.lane.b32.xlu0 %v237, 86
        %v2879 = vpop.permute.xlu0 %2878
        %2880 = vrot.lane.b32.xlu0 %v238, 86
        %v2881 = vpop.permute.xlu0 %2880
        %2882 = vrot.lane.b32.xlu0 %v239, 86
        %v2883 = vpop.permute.xlu0 %2882
        %2884 = vrot.lane.b32.xlu0 %v240, 86
        %v2885 = vpop.permute.xlu0 %2884
        %2886 = vrot.lane.b32.xlu0 %v241, 86
        %v2887 = vpop.permute.xlu0 %2886
        %2888 = vrot.lane.b32.xlu0 %v242, 86
        %v2889 = vpop.permute.xlu0 %2888
        %2890 = vrot.lane.b32.xlu0 %v243, 86
        %v2891 = vpop.permute.xlu0 %2890
        %2892 = vrot.lane.b32.xlu0 %v244, 107
        %v2893 = vpop.permute.xlu0 %2892
        %2894 = vrot.lane.b32.xlu0 %v245, 107
        %v2895 = vpop.permute.xlu0 %2894
        %2896 = vrot.lane.b32.xlu0 %v246, 107
        %v2897 = vpop.permute.xlu0 %2896
        %2898 = vrot.lane.b32.xlu0 %v247, 107
        %v2899 = vpop.permute.xlu0 %2898
        %2900 = vrot.lane.b32.xlu0 %v248, 107
        %v2901 = vpop.permute.xlu0 %2900
        %2902 = vrot.lane.b32.xlu0 %v249, 107
        %v2903 = vpop.permute.xlu0 %2902
        %2904 = vrot.lane.b32.xlu0 %v250, 107
        %v2905 = vpop.permute.xlu0 %2904
        %2906 = vrot.lane.b32.xlu0 %v251, 107
        %v2907 = vpop.permute.xlu0 %2906
        %2908 = vrot.lane.b32.xlu0 %v252, 107
        %v2909 = vpop.permute.xlu0 %2908
        %2910 = vrot.lane.b32.xlu0 %v253, 107
        %v2911 = vpop.permute.xlu0 %2910
        %2912 = vrot.lane.b32.xlu0 %v254, 107
        %v2913 = vpop.permute.xlu0 %2912
        %2914 = vrot.lane.b32.xlu0 %v255, 107
        %v2915 = vpop.permute.xlu0 %2914
        %2916 = vrot.lane.b32.xlu0 %v256, 107
        %v2917 = vpop.permute.xlu0 %2916
        %2918 = vrot.lane.b32.xlu0 %v257, 107
        %v2919 = vpop.permute.xlu0 %2918
        %2920 = vrot.lane.b32.xlu0 %v258, 107
        %v2921 = vpop.permute.xlu0 %2920
        %2922 = vrot.lane.b32.xlu0 %v259, 107
        %v2923 = vpop.permute.xlu0 %2922
        %2924 = vrot.lane.b32.xlu0 %v260, 107
        %v2925 = vpop.permute.xlu0 %2924
        %2926 = vrot.lane.b32.xlu0 %v261, 107
        %v2927 = vpop.permute.xlu0 %2926
        %2928 = vrot.lane.b32.xlu0 %v262, 107
        %v2929 = vpop.permute.xlu0 %2928
        %2930 = vrot.lane.b32.xlu0 %v263, 107
        %v2931 = vpop.permute.xlu0 %2930
        %2932 = vrot.lane.b32.xlu0 %v264, 107
        %v2933 = vpop.permute.xlu0 %2932
        %2934 = vrot.lane.b32.xlu0 %v265, 107
        %v2935 = vpop.permute.xlu0 %2934
        %2936 = vrot.lane.b32.xlu0 %v266, 107
        %v2937 = vpop.permute.xlu0 %2936
        %2938 = vrot.lane.b32.xlu0 %v267, 107
        %v2939 = vpop.permute.xlu0 %2938
        %2940 = vrot.lane.b32.xlu0 %v268, 107
        %v2941 = vpop.permute.xlu0 %2940
        %2942 = vrot.lane.b32.xlu0 %v269, 107
        %v2943 = vpop.permute.xlu0 %2942
        %2944 = vrot.lane.b32.xlu0 %v270, 107
        %v2945 = vpop.permute.xlu0 %2944
        %2946 = vrot.lane.b32.xlu0 %v271, 107
        %v2947 = vpop.permute.xlu0 %2946
        %2948 = vrot.lane.b32.xlu0 %v272, 107
        %v2949 = vpop.permute.xlu0 %2948
        %2950 = vrot.lane.b32.xlu0 %v273, 107
        %v2951 = vpop.permute.xlu0 %2950
        %2952 = vrot.lane.b32.xlu0 %v274, 107
        %v2953 = vpop.permute.xlu0 %2952
        %2954 = vrot.lane.b32.xlu0 %v275, 107
        %v2955 = vpop.permute.xlu0 %2954
        %v2956 = vsel %vm420, %v2861, 0
        %v2958 = vsel %vm420, %v2863, 0
        %v2960 = vsel %vm420, %v2865, 0
        %v2962 = vsel %vm420, %v2867, 0
        %v2964 = vsel %vm420, %v2869, 0
        %v2966 = vsel %vm420, %v2871, 0
        %v2968 = vsel %vm420, %v2873, 0
        %v2970 = vsel %vm420, %v2875, 0
        %v2972 = vsel %vm420, %v2877, 0
        %v2974 = vsel %vm420, %v2879, 0
        %v2976 = vsel %vm420, %v2881, 0
        %v2978 = vsel %vm420, %v2883, 0
        %v2980 = vsel %vm420, %v2885, 0
        %v2982 = vsel %vm420, %v2887, 0
        %v2984 = vsel %vm420, %v2889, 0
        %v2986 = vsel %vm420, %v2891, 0
        %v2988 = vsel %vm420, %v2893, 0
        %v2990 = vsel %vm420, %v2895, 0
        %v2992 = vsel %vm420, %v2897, 0
        %v2994 = vsel %vm420, %v2899, 0
        %v2996 = vsel %vm420, %v2901, 0
        %v2998 = vsel %vm420, %v2903, 0
        %v3000 = vsel %vm420, %v2905, 0
        %v3002 = vsel %vm420, %v2907, 0
        %v3004 = vsel %vm420, %v2909, 0
        %v3006 = vsel %vm420, %v2911, 0
        %v3008 = vsel %vm420, %v2913, 0
        %v3010 = vsel %vm420, %v2915, 0
        %v3012 = vsel %vm420, %v2917, 0
        %v3014 = vsel %vm420, %v2919, 0
        %v3016 = vsel %vm420, %v2921, 0
        %v3018 = vsel %vm420, %v2923, 0
        %v3020 = vsel %vm420, %v2925, 0
        %v3022 = vsel %vm420, %v2927, 0
        %v3024 = vsel %vm420, %v2929, 0
        %v3026 = vsel %vm420, %v2931, 0
        %v3028 = vsel %vm420, %v2933, 0
        %v3030 = vsel %vm420, %v2935, 0
        %v3032 = vsel %vm420, %v2937, 0
        %v3034 = vsel %vm420, %v2939, 0
        %v3036 = vsel %vm420, %v2941, 0
        %v3038 = vsel %vm420, %v2943, 0
        %v3040 = vsel %vm420, %v2945, 0
        %v3042 = vsel %vm420, %v2947, 0
        %v3044 = vsel %vm420, %v2949, 0
        %v3046 = vsel %vm420, %v2951, 0
        %v3048 = vsel %vm420, %v2953, 0
        %v3050 = vsel %vm420, %v2955, 0
        %3052 = vmatprep.subr.mxu0 0.0
        %3053 = vmatpush1.xpose.msra.mxu0 %v2988
        %3054 = vmatprep.subr.mxu0 0.0
        %3055 = vmatpush1.xpose.msra.mxu0 %v2990
        %3056 = vmatprep.subr.mxu0 0.0
        %3057 = vmatpush1.xpose.msra.mxu0 %v2992
        %3058 = vmatprep.subr.mxu0 0.0
        %3059 = vmatpush1.xpose.msra.mxu0 %v2994
        %3060 = vmatprep.subr.mxu0 0.0
        %3061 = vmatpush1.xpose.msra.mxu0 %v2996
        %3062 = vmatprep.subr.mxu0 0.0
        %3063 = vmatpush1.xpose.msra.mxu0 %v2998
        %3064 = vmatprep.subr.mxu0 0.0
        %3065 = vmatpush1.xpose.msra.mxu0 %v3000
        %3066 = vmatprep.subr.mxu0 0.0
        %3067 = vmatpush1.xpose.msra.mxu0 %v3002
        %3068 = vmatprep.subr.mxu0 0.0
        %3069 = vmatpush1.xpose.msra.mxu0 %v3004
        %3070 = vmatprep.subr.mxu0 0.0
        %3071 = vmatpush1.xpose.msra.mxu0 %v3006
        %3072 = vmatprep.subr.mxu0 0.0
        %3073 = vmatpush1.xpose.msra.mxu0 %v3008
        %3074 = vmatprep.subr.mxu0 0.0
        %3075 = vmatpush1.xpose.msra.mxu0 %v3010
        %3076 = vmatprep.subr.mxu0 0.0
        %3077 = vmatpush1.xpose.msra.mxu0 %v3012
        %3078 = vmatprep.subr.mxu0 0.0
        %3079 = vmatpush1.xpose.msra.mxu0 %v3014
        %3080 = vmatprep.subr.mxu0 0.0
        %3081 = vmatpush1.xpose.msra.mxu0 %v3016
        %3082 = vmatprep.subr.mxu0 0.0
        %3083 = vmatpush1.xpose.msra.mxu0 %v3018
        %3084 = vmatprep.subr.mxu0 0.0
        %3085 = vmatpush1.xpose.msra.mxu0 %v3020
        %3086 = vmatprep.subr.mxu0 0.0
        %3087 = vmatpush1.xpose.msra.mxu0 %v3022
        %3088 = vmatprep.subr.mxu0 0.0
        %3089 = vmatpush1.xpose.msra.mxu0 %v3024
        %3090 = vmatprep.subr.mxu0 0.0
        %3091 = vmatpush1.xpose.msra.mxu0 %v3026
        %3092 = vmatprep.subr.mxu0 0.0
        %3093 = vmatpush1.xpose.msra.mxu0 %v3028
        %3094 = vmatprep.subr.mxu0 0.0
        %3095 = vmatpush1.xpose.msra.mxu0 %v3030
        %3096 = vmatprep.subr.mxu0 0.0
        %3097 = vmatpush1.xpose.msra.mxu0 %v3032
        %3098 = vmatprep.subr.mxu0 0.0
        %3099 = vmatpush1.xpose.msra.mxu0 %v3034
        %3100 = vmatprep.subr.mxu0 0.0
        %3101 = vmatpush1.xpose.msra.mxu0 %v3036
        %3102 = vmatprep.subr.mxu0 0.0
        %3103 = vmatpush1.xpose.msra.mxu0 %v3038
        %3104 = vmatprep.subr.mxu0 0.0
        %3105 = vmatpush1.xpose.msra.mxu0 %v3040
        %3106 = vmatprep.subr.mxu0 0.0
        %3107 = vmatpush1.xpose.msra.mxu0 %v3042
        %3108 = vmatprep.subr.mxu0 0.0
        %3109 = vmatpush1.xpose.msra.mxu0 %v3044
        %3110 = vmatprep.subr.mxu0 0.0
        %3111 = vmatpush1.xpose.msra.mxu0 %v3046
        %3112 = vmatprep.subr.mxu0 0.0
        %3113 = vmatpush1.xpose.msra.mxu0 %v3048
        %3114 = vmatprep.subr.mxu0 0.0
        %3115 = vmatpush1.xpose.msra.mxu0 %v3050
        %3116 = vmatprep.mubr.f32.mxu0 0.0
        %3117 = vmatmul.mubr.f32.gmra.mrb[0].mxu0 %v2956
        %v3118 = vpop.f32.mrb[0].mxu0
        %v3119 = vadd.f32 0.0, %v3118
        %v3120 = vpop.f32.mrb[0].mxu0
        %v3121 = vadd.f32 0.0, %v3120
        %3122 = vmatprep.mubr.f32.mxu0 0.0
        %3123 = vmatmul.mubr.f32.gmra.mrb[0].mxu0 %v2958
        %v3124 = vpop.f32.mrb[0].mxu0
        %v3125 = vadd.f32 0.0, %v3124
        %v3126 = vpop.f32.mrb[0].mxu0
        %v3127 = vadd.f32 0.0, %v3126
        %3128 = vmatprep.mubr.f32.mxu0 0.0
        %3129 = vmatmul.mubr.f32.gmra.mrb[0].mxu0 %v2960
        %v3130 = vpop.f32.mrb[0].mxu0
        %v3131 = vadd.f32 0.0, %v3130
        %v3132 = vpop.f32.mrb[0].mxu0
        %v3133 = vadd.f32 0.0, %v3132
        %3134 = vmatprep.mubr.f32.mxu0 0.0
        %3135 = vmatmul.mubr.f32.gmra.mrb[0].mxu0 %v2962
        %v3136 = vpop.f32.mrb[0].mxu0
        %v3137 = vadd.f32 0.0, %v3136
        %v3138 = vpop.f32.mrb[0].mxu0
        %v3139 = vadd.f32 0.0, %v3138
        %3140 = vmatprep.mubr.f32.mxu0 0.0
        %3141 = vmatmul.mubr.f32.gmra.mrb[0].mxu0 %v2964
        %v3142 = vpop.f32.mrb[0].mxu0
        %v3143 = vadd.f32 0.0, %v3142
        %v3144 = vpop.f32.mrb[0].mxu0
        %v3145 = vadd.f32 0.0, %v3144
        %3146 = vmatprep.mubr.f32.mxu0 0.0
        %3147 = vmatmul.mubr.f32.gmra.mrb[0].mxu0 %v2966
        %v3148 = vpop.f32.mrb[0].mxu0
        %v3149 = vadd.f32 0.0, %v3148
        %v3150 = vpop.f32.mrb[0].mxu0
        %v3151 = vadd.f32 0.0, %v3150
        %3152 = vmatprep.mubr.f32.mxu0 0.0
        %3153 = vmatmul.mubr.f32.gmra.mrb[0].mxu0 %v2968
        %v3154 = vpop.f32.mrb[0].mxu0
        %v3155 = vadd.f32 0.0, %v3154
        %v3156 = vpop.f32.mrb[0].mxu0
        %v3157 = vadd.f32 0.0, %v3156
        %3158 = vmatprep.mubr.f32.mxu0 0.0
        %3159 = vmatmul.mubr.f32.gmra.mrb[0].mxu0 %v2970
        %v3160 = vpop.f32.mrb[0].mxu0
        %v3161 = vadd.f32 0.0, %v3160
        %v3162 = vpop.f32.mrb[0].mxu0
        %v3163 = vadd.f32 0.0, %v3162
        %3164 = vmatprep.mubr.f32.mxu0 0.0
        %3165 = vmatmul.mubr.f32.gmra.mrb[0].mxu0 %v2972
        %v3166 = vpop.f32.mrb[0].mxu0
        %v3167 = vadd.f32 0.0, %v3166
        %v3168 = vpop.f32.mrb[0].mxu0
        %v3169 = vadd.f32 0.0, %v3168
        %3170 = vmatprep.mubr.f32.mxu0 0.0
        %3171 = vmatmul.mubr.f32.gmra.mrb[0].mxu0 %v2974
        %v3172 = vpop.f32.mrb[0].mxu0
        %v3173 = vadd.f32 0.0, %v3172
        %v3174 = vpop.f32.mrb[0].mxu0
        %v3175 = vadd.f32 0.0, %v3174
        %3176 = vmatprep.mubr.f32.mxu0 0.0
        %3177 = vmatmul.mubr.f32.gmra.mrb[0].mxu0 %v2976
        %v3178 = vpop.f32.mrb[0].mxu0
        %v3179 = vadd.f32 0.0, %v3178
        %v3180 = vpop.f32.mrb[0].mxu0
        %v3181 = vadd.f32 0.0, %v3180
        %3182 = vmatprep.mubr.f32.mxu0 0.0
        %3183 = vmatmul.mubr.f32.gmra.mrb[0].mxu0 %v2978
        %v3184 = vpop.f32.mrb[0].mxu0
        %v3185 = vadd.f32 0.0, %v3184
        %v3186 = vpop.f32.mrb[0].mxu0
        %v3187 = vadd.f32 0.0, %v3186
        %3188 = vmatprep.mubr.f32.mxu0 0.0
        %3189 = vmatmul.mubr.f32.gmra.mrb[0].mxu0 %v2980
        %v3190 = vpop.f32.mrb[0].mxu0
        %v3191 = vadd.f32 0.0, %v3190
        %v3192 = vpop.f32.mrb[0].mxu0
        %v3193 = vadd.f32 0.0, %v3192
        %3194 = vmatprep.mubr.f32.mxu0 0.0
        %3195 = vmatmul.mubr.f32.gmra.mrb[0].mxu0 %v2982
        %v3196 = vpop.f32.mrb[0].mxu0
        %v3197 = vadd.f32 0.0, %v3196
        %v3198 = vpop.f32.mrb[0].mxu0
        %v3199 = vadd.f32 0.0, %v3198
        %3200 = vmatprep.mubr.f32.mxu0 0.0
        %3201 = vmatmul.mubr.f32.gmra.mrb[0].mxu0 %v2984
        %v3202 = vpop.f32.mrb[0].mxu0
        %v3203 = vadd.f32 0.0, %v3202
        %v3204 = vpop.f32.mrb[0].mxu0
        %v3205 = vadd.f32 0.0, %v3204
        %3206 = vmatprep.mubr.f32.mxu0 0.0
        %3207 = vmatmul.mubr.f32.gmra.mrb[0].mxu0 %v2986
        %v3208 = vpop.f32.mrb[0].mxu0
        %v3209 = vadd.f32 0.0, %v3208
        %v3210 = vpop.f32.mrb[0].mxu0
        %v3211 = vadd.f32 0.0, %v3210
        %3212 = vdwg.mxu0
        %v3213 = vadd.f32 %v2828, %v3119
        %v3214 = vadd.f32 %v2829, %v3121
        %v3215 = vadd.f32 %v2830, %v3125
        %v3216 = vadd.f32 %v2831, %v3127
        %v3217 = vadd.f32 %v2832, %v3131
        %v3218 = vadd.f32 %v2833, %v3133
        %v3219 = vadd.f32 %v2834, %v3137
        %v3220 = vadd.f32 %v2835, %v3139
        %v3221 = vadd.f32 %v2836, %v3143
        %v3222 = vadd.f32 %v2837, %v3145
        %v3223 = vadd.f32 %v2838, %v3149
        %v3224 = vadd.f32 %v2839, %v3151
        %v3225 = vadd.f32 %v2840, %v3155
        %v3226 = vadd.f32 %v2841, %v3157
        %v3227 = vadd.f32 %v2842, %v3161
        %v3228 = vadd.f32 %v2843, %v3163
        %v3229 = vadd.f32 %v2844, %v3167
        %v3230 = vadd.f32 %v2845, %v3169
        %v3231 = vadd.f32 %v2846, %v3173
        %v3232 = vadd.f32 %v2847, %v3175
        %v3233 = vadd.f32 %v2848, %v3179
        %v3234 = vadd.f32 %v2849, %v3181
        %v3235 = vadd.f32 %v2850, %v3185
        %v3236 = vadd.f32 %v2851, %v3187
        %v3237 = vadd.f32 %v2852, %v3191
        %v3238 = vadd.f32 %v2853, %v3193
        %v3239 = vadd.f32 %v2854, %v3197
        %v3240 = vadd.f32 %v2855, %v3199
        %v3241 = vadd.f32 %v2856, %v3203
        %v3242 = vadd.f32 %v2857, %v3205
        %v3243 = vadd.f32 %v2858, %v3209
        %v3244 = vadd.f32 %v2859, %v3211
        %v3245 = vld [vmem:[%s224] sm:$0x3]
        %v3247 = vlaneseq
        %v3248 = vshrl.u32 %v3247, 7
        %v3249 = vsub.s32 0, %v3248
        %v3250 = vrot.slane %v3245, %v3249
        %v3251 = vlaneseq
        %v3252 = vshrl.u32 %v3251, 7
        %v3253 = vsub.s32 1, %v3252
        %v3254 = vrot.slane %v3245, %v3253
        %v3257 = vadd.f32 %v3213, %v3250
        %v3258 = vadd.f32 %v3214, %v3254
        %v3259 = vadd.f32 %v3215, %v3250
        %v3260 = vadd.f32 %v3216, %v3254
        %v3261 = vadd.f32 %v3217, %v3250
        %v3262 = vadd.f32 %v3218, %v3254
        %v3263 = vadd.f32 %v3219, %v3250
        %v3264 = vadd.f32 %v3220, %v3254
        %v3265 = vadd.f32 %v3221, %v3250
        %v3266 = vadd.f32 %v3222, %v3254
        %v3267 = vadd.f32 %v3223, %v3250
        %v3268 = vadd.f32 %v3224, %v3254
        %v3269 = vadd.f32 %v3225, %v3250
        %v3270 = vadd.f32 %v3226, %v3254
        %v3271 = vadd.f32 %v3227, %v3250
        %v3272 = vadd.f32 %v3228, %v3254
        %v3273 = vadd.f32 %v3229, %v3250
        %v3274 = vadd.f32 %v3230, %v3254
        %v3275 = vadd.f32 %v3231, %v3250
        %v3276 = vadd.f32 %v3232, %v3254
        %v3277 = vadd.f32 %v3233, %v3250
        %v3278 = vadd.f32 %v3234, %v3254
        %v3279 = vadd.f32 %v3235, %v3250
        %v3280 = vadd.f32 %v3236, %v3254
        %v3281 = vadd.f32 %v3237, %v3250
        %v3282 = vadd.f32 %v3238, %v3254
        %v3283 = vadd.f32 %v3239, %v3250
        %v3284 = vadd.f32 %v3240, %v3254
        %v3285 = vadd.f32 %v3241, %v3250
        %v3286 = vadd.f32 %v3242, %v3254
        %v3287 = vadd.f32 %v3243, %v3250
        %v3288 = vadd.f32 %v3244, %v3254
        %3289 = vst [vmem:[%s208] sm:$0xff] %v3257
        %3290 = vst [vmem:[%s208 + $0x8] sm:$0xff] %v3258
        %3291 = vst [vmem:[%s208 + $0x10] sm:$0xff] %v3259
        %3292 = vst [vmem:[%s208 + $0x18] sm:$0xff] %v3260
        %3293 = vst [vmem:[%s208 + $0x20] sm:$0xff] %v3261
        %3294 = vst [vmem:[%s208 + $0x28] sm:$0xff] %v3262
        %3295 = vst [vmem:[%s208 + $0x30] sm:$0xff] %v3263
        %3296 = vst [vmem:[%s208 + $0x38] sm:$0xff] %v3264
        %3297 = vst [vmem:[%s208 + $0x40] sm:$0xff] %v3265
        %3298 = vst [vmem:[%s208 + $0x48] sm:$0xff] %v3266
        %3299 = vst [vmem:[%s208 + $0x50] sm:$0xff] %v3267
        %3300 = vst [vmem:[%s208 + $0x58] sm:$0xff] %v3268
        %3301 = vst [vmem:[%s208 + $0x60] sm:$0xff] %v3269
        %3302 = vst [vmem:[%s208 + $0x68] sm:$0xff] %v3270
        %3303 = vst [vmem:[%s208 + $0x70] sm:$0xff] %v3271
        %3304 = vst [vmem:[%s208 + $0x78] sm:$0xff] %v3272
        %3305 = vst [vmem:[%s208 + $0x80] sm:$0xff] %v3273
        %3306 = vst [vmem:[%s208 + $0x88] sm:$0xff] %v3274
        %3307 = vst [vmem:[%s208 + $0x90] sm:$0xff] %v3275
        %3308 = vst [vmem:[%s208 + $0x98] sm:$0xff] %v3276
        %3309 = vst [vmem:[%s208 + $0xa0] sm:$0xff] %v3277
        %3310 = vst [vmem:[%s208 + $0xa8] sm:$0xff] %v3278
        %3311 = vst [vmem:[%s208 + $0xb0] sm:$0xff] %v3279
        %3312 = vst [vmem:[%s208 + $0xb8] sm:$0xff] %v3280
        %3313 = vst [vmem:[%s208 + $0xc0] sm:$0xff] %v3281
        %3314 = vst [vmem:[%s208 + $0xc8] sm:$0xff] %v3282
        %3315 = vst [vmem:[%s208 + $0xd0] sm:$0xff] %v3283
        %3316 = vst [vmem:[%s208 + $0xd8] sm:$0xff] %v3284
        %3317 = vst [vmem:[%s208 + $0xe0] sm:$0xff] %v3285
        %3318 = vst [vmem:[%s208 + $0xe8] sm:$0xff] %v3286
        %3319 = vst [vmem:[%s208 + $0xf0] sm:$0xff] %v3287
        %3320 = vst [vmem:[%s208 + $0xf8] sm:$0xff] %v3288
        %s3321 = sand.u32 %s117, 1
        %s3322 = scalar_lea.sflag [#allocation3], %s3321
        %s3323 = sand.u32 %s117, 1
        %s3324 = smul.addr %s3323, 256
        %s3325 = scalar_lea.vmem [#allocation2], %s3324
        // Predicated region
        $region33: #{decoder_forward.1} parent=31 // pred_check
          %p3326 = pneg %p127
        $region34: #{decoder_forward.1} parent=31 // pred_check_branch
          %3328 = sbr.rel (%p3326) target = $region36
        $region35: #{decoder_forward.1} parent=31 // pred_region
          %s3329 = smul.u32 16, %s21
          %s3330 = smul.u32 2, %s22
          %s3332 = ssub.s32 4096, 4096
          %3333 = vsyncadd %s3322, %s3332
          %s3334 = smul.addr %s3329, 4
          %s3335 = sadd.s32 %s3330, %s3334
          %s3336 = smul.addr %s3335, 128
          %s3337 = scalar_lea.hbm %s3, %s3336
          %s3338 = sshll.u32 %s3325, 4
          %s3339 = int_to_ptr.vmem [resolvable:$true] %s3338
          %3344 = dma.vmem_to_hbm [thread:$0]  %s3339, 4096, %s3337, %s3322, 256, 512, 16
        $region36: #{decoder_forward.1} parent=31 // pred_fallthru
          _
      $region32: #{decoder_forward.1} parent=5 // pred_fallthru
        _
      %p3345 = scmp.le.s32.totalorder 2, %s12
      // Predicated region
      $region37: #{decoder_forward.1} parent=5 // pred_check
        %p3346 = pneg %p3345
      $region38: #{decoder_forward.1} parent=5 // pred_check_branch
        %3348 = sbr.rel (%p3346) target = $region40
      $region39: #{decoder_forward.1} parent=5 // pred_region
        %s3349 = ssub.s32 %s12, 2
        // Predicated region
        $region41: #{decoder_forward.1} parent=39 // pred_check
          %p3350 = pneg %p133
        $region42: #{decoder_forward.1} parent=39 // pred_check_branch
          %3352 = sbr.rel (%p3350) target = $region44
        $region43: #{decoder_forward.1} parent=39 // pred_region
          %s3353 = sand.u32 %s118, 1
          %s3354 = scalar_lea.sflag [#allocation3], %s3353
          %s3355 = sand.u32 %s118, 1
          %s3356 = smul.addr %s3355, 256
          %s3357 = scalar_lea.vmem [#allocation2], %s3356
          %3358 = dma.done %s3354, 4096
        $region44: #{decoder_forward.1} parent=39 // pred_fallthru
          _
      $region40: #{decoder_forward.1} parent=5 // pred_fallthru
        _
    $region6: #{decoder_forward.1} parent=1 // loop_footer
      %s16 = sadd.s32 1, %s12
    $region7: #{decoder_forward.1} parent=1 // loop_footer_branch
      %11 = sbr.rel target = $region3
    $region8: #{decoder_forward.1} parent=1 // loop_exit
      _
    %3359 = vsyncpa [#allocation3], 1
    %s3360 = scalar_lea.sflag [#allocation3], 1
    %3361 = vsyncpa %s3360, 1

</llo_original>
